<compile_context>
chip_gen: v5e
topology: v5e:2x2
jax: 0.10.0
libtpu: 0.0.40
codegen_flags: <defaults>
</compile_context>

<pallas_src>
import functools

import jax
import jax.numpy as jnp
import numpy as np
from jax.experimental import pallas as pl
from jax.experimental.pallas import tpu as pltpu


# ----------------------------------------------------------------------------
# Shared math (pure functions on values; used both inside the kernels and by
# the "emulated" reference so the correctness check is structural, not fuzzy).
# ----------------------------------------------------------------------------
def _fused_gconv_prelu(h, adj, w_cat, b, alpha):
    """One DenseGraphConv + PReLU with W_rel/W_root fused into a single matmul.

    h:     (Bt*N, C)   bf16 node features (flattened over the batch tile)
    adj:   (Bt, N, N)  bf16 adjacency
    w_cat: (2C, K)     bf16 = [W_rel; W_root]
    b:     (1, K)      f32
    returns (Bt*N, K)  f32
    """
    bt, n, _ = adj.shape
    c = h.shape[-1]
    agg = jnp.einsum("bij,bjc->bic", adj, h.reshape(bt, n, c),
                     preferred_element_type=jnp.float32)          # (Bt, N, C) f32
    cat = jnp.concatenate(
        [agg.reshape(bt * n, c).astype(jnp.bfloat16), h], axis=-1)  # (Bt*N, 2C) bf16
    out = jnp.dot(cat, w_cat, preferred_element_type=jnp.float32) + b
    return jnp.where(out >= 0, out, alpha * out)


def _reassoc_gconv_prelu(h, adj, w_rel, w_root, b, alpha):
    """Layer with the adj matmul reassociated: adj @ (h @ W_rel) + h @ W_root + b.

    Cheaper when the output channel count is smaller than the input channel count
    (conv_out < conv_channel), since the N x N contraction runs at width C_out.
    """
    bt, n, _ = adj.shape
    p = jnp.dot(h, w_rel, preferred_element_type=jnp.float32)      # (Bt*N, C_out)
    c_out = p.shape[-1]
    agg = jnp.einsum("bij,bjc->bic", adj,
                     p.reshape(bt, n, c_out).astype(jnp.bfloat16),
                     preferred_element_type=jnp.float32)
    out = (agg.reshape(bt * n, c_out)
           + jnp.dot(h, w_root, preferred_element_type=jnp.float32)
           + b)
    return jnp.where(out >= 0, out, alpha * out)


def _head_math(feat_f32, w1_bf, b1, w2_bf, b2):
    """Linear -> ReLU -> (BN folded into) Linear.  bf16 matmuls, f32 accumulate."""
    z = jnp.dot(feat_f32.astype(jnp.bfloat16), w1_bf,
                preferred_element_type=jnp.float32) + b1
    z = jnp.maximum(z, 0.0)
    return jnp.dot(z.astype(jnp.bfloat16), w2_bf,
                   preferred_element_type=jnp.float32) + b2


# ----------------------------------------------------------------------------
# Kernels
# ----------------------------------------------------------------------------
def _feature_kernel(x_ref, adj_ref,
                    w1_ref, b1_ref,          # layer 1: (2*C_in, C_h), (1, C_h)
                    w2_ref, b2_ref,          # layer 2: (2*C_h,  C_h), (1, C_h)
                    w3r_ref, w3n_ref, b3_ref,  # layer 3: (C_h, C_out) x2, (1, C_out)
                    alpha_ref,               # (3,) f32 in SMEM
                    o_ref):                  # (Bt, N, C_out) f32
    bt, n, c_in = x_ref.shape
    adj = adj_ref[...]                                   # (Bt, N, N) bf16
    h = x_ref[...].reshape(bt * n, c_in)                 # (Bt*N, C_in) bf16
    h = _fused_gconv_prelu(h, adj, w1_ref[...], b1_ref[...], alpha_ref[0])
    h = _fused_gconv_prelu(h.astype(jnp.bfloat16), adj,
                           w2_ref[...], b2_ref[...], alpha_ref[1])
    h = _reassoc_gconv_prelu(h.astype(jnp.bfloat16), adj,
                             w3r_ref[...], w3n_ref[...], b3_ref[...], alpha_ref[2])
    o_ref[...] = h.reshape(bt, n, o_ref.shape[-1])


def _head_kernel(f_ref, w1_ref, b1_ref, w2_ref, b2_ref, o_ref):
    o_ref[...] = _head_math(f_ref[...], w1_ref[...], b1_ref[...],
                            w2_ref[...], b2_ref[...])


# ----------------------------------------------------------------------------
# Parameter packing helpers (shared by the wrapper and the emulated reference)
# ----------------------------------------------------------------------------
def _pack_conv_params(params):
    tobf = lambda a: a.astype(jnp.bfloat16)
    w1c = tobf(jnp.concatenate([params["w1_rel"], params["w1_root"]], axis=0))
    w2c = tobf(jnp.concatenate([params["w2_rel"], params["w2_root"]], axis=0))
    return (w1c, params["b1"].reshape(1, -1),
            w2c, params["b2"].reshape(1, -1),
            tobf(params["w3_rel"]), tobf(params["w3_root"]),
            params["b3"].reshape(1, -1))


def _fold_head_params(params, eps=1e-5):
    """Fold eval-mode BatchNorm1d into the second head Linear."""
    scale = params["bn_gamma"] / jnp.sqrt(params["bn_var"] + eps)
    shift = params["bn_beta"] - params["bn_mean"] * scale
    w1_bf = params["head_w1"].astype(jnp.bfloat16)
    b1 = params["head_b1"].reshape(1, -1)
    w2f = (params["head_w2"] * scale[:, None]).astype(jnp.bfloat16)
    b2f = (shift @ params["head_w2"] + params["head_b2"]).reshape(1, 1)
    return w1_bf, b1, w2f, b2f


def _round_up(a, m):
    return ((a + m - 1) // m) * m


def _pick_batch_tile(batch, n_pad, elem_bytes=2, adj_budget_bytes=8 * 1024 * 1024):
    """Graphs per grid step: fit the double-buffered bf16 adjacency tile into a
    conservative VMEM budget (safe on v5e 16 MiB / v7x 32 MiB scoped defaults),
    keep it a multiple of 8 (sublane), and keep >=2 grid steps when possible so
    both v7x TensorCores get work."""
    per_sample = 2 * n_pad * n_pad * elem_bytes
    bt = max(8, min(64, adj_budget_bytes // max(per_sample, 1)))
    bt = (bt // 8) * 8
    while bt > 8 and -(-batch // bt) < 2:
        bt //= 2
    return max(8, (bt // 8) * 8)


def _const_spec(shape):
    nd = len(shape)
    return pl.BlockSpec(shape, lambda b, _nd=nd: (0,) * _nd)


# ----------------------------------------------------------------------------
# Forward wrapper: ConnectomeGNN.forward (mesh arg is unused by the module)
# ----------------------------------------------------------------------------
@functools.partial(jax.jit, static_argnames=("agg",))
def connectome_gnn_forward(x, adj, params, agg="flatten"):
    B, N, c_in = x.shape
    c_h = params["w1_rel"].shape[1]
    c_out = params["w3_rel"].shape[1]
    hidden = params["head_w1"].shape[1]

    # ---- pad nodes to a sublane multiple and batch to a multiple of the tile ----
    n_p = _round_up(N, 8)
    bt = _pick_batch_tile(B, n_p)
    b_p = _round_up(B, bt)
    grid = (b_p // bt,)

    xp = jnp.zeros((b_p, n_p, c_in), jnp.float32).at[:B, :N, :].set(x)
    ap = jnp.zeros((b_p, n_p, n_p), jnp.float32).at[:B, :N, :N].set(adj)
    x_bf = xp.astype(jnp.bfloat16)          # halve HBM traffic of the inputs
    a_bf = ap.astype(jnp.bfloat16)

    w1c, b1, w2c, b2, w3r, w3n, b3 = _pack_conv_params(params)
    alphas = params["alphas"].astype(jnp.float32)

    feats = pl.pallas_call(
        _feature_kernel,
        out_shape=jax.ShapeDtypeStruct((b_p, n_p, c_out), jnp.float32),
        grid=grid,
        in_specs=[
            pl.BlockSpec((bt, n_p, c_in), lambda b: (b, 0, 0)),
            pl.BlockSpec((bt, n_p, n_p), lambda b: (b, 0, 0)),
            _const_spec((2 * c_in, c_h)), _const_spec((1, c_h)),
            _const_spec((2 * c_h, c_h)), _const_spec((1, c_h)),
            _const_spec((c_h, c_out)), _const_spec((c_h, c_out)),
            _const_spec((1, c_out)),
            pl.BlockSpec(memory_space=pltpu.MemorySpace.SMEM),   # PReLU slopes
        ],
        out_specs=pl.BlockSpec((bt, n_p, c_out), lambda b: (b, 0, 0)),
        compiler_params=pltpu.CompilerParams(
            dimension_semantics=("parallel",),
            vmem_limit_bytes=32 * 1024 * 1024,
        ),
    )(x_bf, a_bf, w1c, b1, w2c, b2, w3r, w3n, b3, alphas)

    feats = feats[:, :N, :]                 # drop padded nodes
    if agg == "flatten":
        feat2 = feats.reshape(b_p, N * c_out)        # torch.nn.Flatten(start_dim=1)
    else:
        feat2 = jnp.mean(feats, axis=-2)             # torch.mean(x, dim=-2)
    f_dim = feat2.shape[-1]

    wh1, bh1, wh2, bh2 = _fold_head_params(params)

    out = pl.pallas_call(
        _head_kernel,
        out_shape=jax.ShapeDtypeStruct((b_p, 1), jnp.float32),
        grid=grid,
        in_specs=[
            pl.BlockSpec((bt, f_dim), lambda b: (b, 0)),
            _const_spec((f_dim, hidden)), _const_spec((1, hidden)),
            _const_spec((hidden, 1)), _const_spec((1, 1)),
        ],
        out_specs=pl.BlockSpec((bt, 1), lambda b: (b, 0)),
        compiler_params=pltpu.CompilerParams(dimension_semantics=("parallel",)),
    )(feat2, wh1, bh1, wh2, bh2)

    return out[:B]


# ----------------------------------------------------------------------------
# References
# ----------------------------------------------------------------------------
def _reference_emulated(x, adj, params, agg="flatten"):
    """Same math as the kernels (bf16 matmuls, fused/reassociated layers, BN fold)."""
    B, N, c_in = x.shape
    c_out = params["w3_rel"].shape[1]
    w1c, b1, w2c, b2, w3r, w3n, b3 = _pack_conv_params(params)
    a_bf = adj.astype(jnp.bfloat16)
    h = x.astype(jnp.bfloat16).reshape(B * N, c_in)
    h = _fused_gconv_prelu(h, a_bf, w1c, b1, params["alphas"][0])
    h = _fused_gconv_prelu(h.astype(jnp.bfloat16), a_bf, w2c, b2, params["alphas"][1])
    h = _reassoc_gconv_prelu(h.astype(jnp.bfloat16), a_bf, w3r, w3n, b3,
                             params["alphas"][2])
    h = h.reshape(B, N, c_out)
    feat = h.reshape(B, N * c_out) if agg == "flatten" else jnp.mean(h, axis=-2)
    wh1, bh1, wh2, bh2 = _fold_head_params(params)
    return _head_math(feat, wh1, bh1, wh2, bh2)


def _reference_f32(x, adj, params, agg="flatten"):
    """PyTorch-faithful f32 reference (eval-mode BatchNorm)."""
    def layer(h, wr, wn, b, a):
        out = jnp.einsum("bij,bjc->bic", adj, h) @ wr + h @ wn + b
        return jnp.where(out >= 0, out, a * out)

    h = layer(x, params["w1_rel"], params["w1_root"], params["b1"], params["alphas"][0])
    h = layer(h, params["w2_rel"], params["w2_root"], params["b2"], params["alphas"][1])
    h = layer(h, params["w3_rel"], params["w3_root"], params["b3"], params["alphas"][2])
    feat = h.reshape(h.shape[0], -1) if agg == "flatten" else jnp.mean(h, axis=-2)
    z = jnp.maximum(feat @ params["head_w1"] + params["head_b1"], 0.0)
    eps = 1e-5
    z = ((z - params["bn_mean"]) / jnp.sqrt(params["bn_var"] + eps)
         * params["bn_gamma"] + params["bn_beta"])
    return z @ params["head_w2"] + params["head_b2"]


# ----------------------------------------------------------------------------
# Deterministic parameter init + demo
# ----------------------------------------------------------------------------
def init_params(key, n_nodes, c_in, c_h, c_out, hidden, agg="flatten"):
    feat_dim = n_nodes * c_out if agg == "flatten" else c_out
    ks = jax.random.split(key, 16)

    def lin(kw, shape, fan_in):
        bound = 1.0 / np.sqrt(fan_in)
        return jax.random.uniform(kw, shape, jnp.float32, -bound, bound)

    return {
        # DenseGraphConv(in, out): lin_rel (with bias) + lin_root (no bias)
        "w1_rel": lin(ks[0], (c_in, c_h), c_in),
        "w1_root": lin(ks[1], (c_in, c_h), c_in),
        "b1": lin(ks[2], (c_h,), c_in),
        "w2_rel": lin(ks[3], (c_h, c_h), c_h),
        "w2_root": lin(ks[4], (c_h, c_h), c_h),
        "b2": lin(ks[5], (c_h,), c_h),
        "w3_rel": lin(ks[6], (c_h, c_out), c_h),
        "w3_root": lin(ks[7], (c_h, c_out), c_h),
        "b3": lin(ks[8], (c_out,), c_h),
        "alphas": jnp.full((3,), 0.25, jnp.float32),      # PReLU default slope
        # head: Linear(feat, hidden) -> ReLU -> BatchNorm1d(hidden) -> Linear(hidden, 1)
        "head_w1": lin(ks[9], (feat_dim, hidden), feat_dim),
        "head_b1": lin(ks[10], (hidden,), feat_dim),
        "head_w2": lin(ks[11], (hidden, 1), hidden),
        "head_b2": lin(ks[12], (1,), hidden),
        # BatchNorm1d eval-mode affine/stats (non-trivial so the fold is exercised)
        "bn_gamma": 1.0 + 0.1 * jax.random.normal(ks[13], (hidden,), jnp.float32),
        "bn_beta": 0.1 * jax.random.normal(ks[14], (hidden,), jnp.float32),
        "bn_mean": 0.1 * jax.random.normal(ks[15], (hidden,), jnp.float32),
        "bn_var": 1.2 * jnp.ones((hidden,), jnp.float32),
    }


if __name__ == "__main__":
    # Small ConnectomeConf-style config: NODES=16, in_channel=8, conv_channel=16,
    # conv_out=8, agg='flatten', head hidden=16.  B=16 -> 2 grid steps of Bt=8.
    B, NODES, C_IN, C_H, C_OUT, HIDDEN = 16, 16, 8, 16, 8, 16

    key = jax.random.PRNGKey(0)
    k_x, k_adj, k_p = jax.random.split(key, 3)

    x = jax.random.normal(k_x, (B, NODES, C_IN), jnp.float32)
    adj_raw = jax.random.uniform(k_adj, (B, NODES, NODES), jnp.float32)
    adj = 0.5 * (adj_raw + jnp.swapaxes(adj_raw, -1, -2))     # symmetric dense adjacency

    params = init_params(k_p, NODES, C_IN, C_H, C_OUT, HIDDEN, agg="flatten")

    out = connectome_gnn_forward(x, adj, params, agg="flatten")
    out = jax.block_until_ready(out)
    assert out.shape == (B, 1), out.shape

    # structural check: identical math (bf16 matmuls, fused weights, BN fold)
    ref_same = _reference_emulated(x, adj, params, agg="flatten")
    np.testing.assert_allclose(np.asarray(out), np.asarray(ref_same),
                               rtol=5e-3, atol=5e-3)

    # semantics check vs. full-f32 PyTorch-style reference (bf16 matmul tolerance)
    ref_f32 = _reference_f32(x, adj, params, agg="flatten")
    np.testing.assert_allclose(np.asarray(out), np.asarray(ref_f32),
                               rtol=1e-1, atol=5e-1)

    print("KERNEL_OK")
</pallas_src>

<mosaic_0001>
module attributes {stable_mosaic.version = 11 : i64} {
  func.func @_feature_kernel(%arg0: i32, %arg1: memref<8x16x8xbf16, #tpu.memory_space<vmem>>, %arg2: memref<8x16x16xbf16, #tpu.memory_space<vmem>>, %arg3: memref<16x16xbf16, #tpu.memory_space<vmem>>, %arg4: memref<1x16xf32, #tpu.memory_space<vmem>>, %arg5: memref<32x16xbf16, #tpu.memory_space<vmem>>, %arg6: memref<1x16xf32, #tpu.memory_space<vmem>>, %arg7: memref<16x8xbf16, #tpu.memory_space<vmem>>, %arg8: memref<16x8xbf16, #tpu.memory_space<vmem>>, %arg9: memref<1x8xf32, #tpu.memory_space<vmem>>, %arg10: memref<3xf32, #tpu.memory_space<smem>>, %arg11: memref<8x16x8xf32, #tpu.memory_space<vmem>>) attributes {dimension_semantics = [#tpu.dimension_semantics<parallel>], iteration_bounds = array<i64: 2>, scalar_prefetch = 0 : i64, scratch_operands = 0 : i64, tpu.core_type = #tpu.core_type<tc>, window_params = [{transform_indices = @transform_0, window_bounds = array<i64: 8, 16, 8>}, {transform_indices = @transform_1, window_bounds = array<i64: 8, 16, 16>}, {pipeline_mode = #tpu.pipeline_mode<synchronous>, transform_indices = @transform_2, window_bounds = array<i64: 16, 16>}, {pipeline_mode = #tpu.pipeline_mode<synchronous>, transform_indices = @transform_3, window_bounds = array<i64: 1, 16>}, {pipeline_mode = #tpu.pipeline_mode<synchronous>, transform_indices = @transform_4, window_bounds = array<i64: 32, 16>}, {pipeline_mode = #tpu.pipeline_mode<synchronous>, transform_indices = @transform_5, window_bounds = array<i64: 1, 16>}, {pipeline_mode = #tpu.pipeline_mode<synchronous>, transform_indices = @transform_6, window_bounds = array<i64: 16, 8>}, {pipeline_mode = #tpu.pipeline_mode<synchronous>, transform_indices = @transform_7, window_bounds = array<i64: 16, 8>}, {pipeline_mode = #tpu.pipeline_mode<synchronous>, transform_indices = @transform_8, window_bounds = array<i64: 1, 8>}, {transform_indices = @transform_9, window_bounds = array<i64: 3>}, {transform_indices = @transform_10, window_bounds = array<i64: 8, 16, 8>}]} {
    %c0 = arith.constant 0 : index
    %c0_0 = arith.constant 0 : index
    %c0_1 = arith.constant 0 : index
    %0 = vector.load %arg2[%c0, %c0_0, %c0_1] : memref<8x16x16xbf16, #tpu.memory_space<vmem>>, vector<8x16x16xbf16>
    %c0_2 = arith.constant 0 : index
    %c0_3 = arith.constant 0 : index
    %c0_4 = arith.constant 0 : index
    %1 = vector.load %arg1[%c0_2, %c0_3, %c0_4] : memref<8x16x8xbf16, #tpu.memory_space<vmem>>, vector<8x16x8xbf16>
    %2 = vector.shape_cast %1 : vector<8x16x8xbf16> to vector<128x8xbf16>
    %c0_5 = arith.constant 0 : index
    %c0_6 = arith.constant 0 : index
    %3 = vector.load %arg3[%c0_5, %c0_6] : memref<16x16xbf16, #tpu.memory_space<vmem>>, vector<16x16xbf16>
    %c0_7 = arith.constant 0 : index
    %c0_8 = arith.constant 0 : index
    %4 = vector.load %arg4[%c0_7, %c0_8] : memref<1x16xf32, #tpu.memory_space<vmem>>, vector<1x16xf32>
    %c0_9 = arith.constant 0 : index
    %5 = memref.load %arg10[%c0_9] : memref<3xf32, #tpu.memory_space<smem>>
    %6 = vector.shape_cast %2 : vector<128x8xbf16> to vector<8x16x8xbf16>
    "tpu.trace_start"() <{level = 10 : i32, message = "bij,bjc->bic"}> : () -> ()
    %cst = arith.constant dense<0.000000e+00> : vector<8x16x8xf32>
    %7 = tpu.matmul %0, %6, %cst {dimension_numbers = #tpu.dot_dimension_numbers<[2], [1], [1], [2], [0, 0, 0, 1, 1, 2], [0], [0]>} : vector<8x16x16xbf16>, vector<8x16x8xbf16>, vector<8x16x8xf32> -> vector<8x16x8xf32>
    "tpu.trace_stop"() : () -> ()
    %8 = vector.shape_cast %7 : vector<8x16x8xf32> to vector<128x8xf32>
    %9 = arith.truncf %8 : vector<128x8xf32> to vector<128x8xbf16>
    %10 = tpu.concatenate %9, %2 in 1 : vector<128x8xbf16>, vector<128x8xbf16> -> vector<128x16xbf16>
    %cst_10 = arith.constant dense<0.000000e+00> : vector<128x16xf32>
    %11 = tpu.matmul %10, %3, %cst_10 {dimension_numbers = #tpu.dot_dimension_numbers<[1], [0], [0], [1], [0, 0, 1, 1], [], []>} : vector<128x16xbf16>, vector<16x16xbf16>, vector<128x16xf32> -> vector<128x16xf32>
    %12 = vector.broadcast %4 : vector<1x16xf32> to vector<128x16xf32>
    %13 = arith.addf %11, %12 : vector<128x16xf32>
    %cst_11 = arith.constant 0.000000e+00 : f32
    %14 = vector.broadcast %cst_11 : f32 to vector<128x16xf32>
    %15 = arith.cmpf oge, %13, %14 : vector<128x16xf32>
    %16 = vector.broadcast %5 : f32 to vector<128x16xf32>
    %17 = arith.mulf %16, %13 : vector<128x16xf32>
    %18 = arith.select %15, %13, %17 : vector<128x16xi1>, vector<128x16xf32>
    %19 = arith.truncf %18 : vector<128x16xf32> to vector<128x16xbf16>
    %c0_12 = arith.constant 0 : index
    %c0_13 = arith.constant 0 : index
    %20 = vector.load %arg5[%c0_12, %c0_13] : memref<32x16xbf16, #tpu.memory_space<vmem>>, vector<32x16xbf16>
    %c0_14 = arith.constant 0 : index
    %c0_15 = arith.constant 0 : index
    %21 = vector.load %arg6[%c0_14, %c0_15] : memref<1x16xf32, #tpu.memory_space<vmem>>, vector<1x16xf32>
    %c1 = arith.constant 1 : index
    %22 = memref.load %arg10[%c1] : memref<3xf32, #tpu.memory_space<smem>>
    %23 = vector.shape_cast %19 : vector<128x16xbf16> to vector<8x16x16xbf16>
    "tpu.trace_start"() <{level = 10 : i32, message = "bij,bjc->bic"}> : () -> ()
    %cst_16 = arith.constant dense<0.000000e+00> : vector<8x16x16xf32>
    %24 = tpu.matmul %0, %23, %cst_16 {dimension_numbers = #tpu.dot_dimension_numbers<[2], [1], [1], [2], [0, 0, 0, 1, 1, 2], [0], [0]>} : vector<8x16x16xbf16>, vector<8x16x16xbf16>, vector<8x16x16xf32> -> vector<8x16x16xf32>
    "tpu.trace_stop"() : () -> ()
    %25 = vector.shape_cast %24 : vector<8x16x16xf32> to vector<128x16xf32>
    %26 = arith.truncf %25 : vector<128x16xf32> to vector<128x16xbf16>
    %27 = tpu.concatenate %26, %19 in 1 : vector<128x16xbf16>, vector<128x16xbf16> -> vector<128x32xbf16>
    %cst_17 = arith.constant dense<0.000000e+00> : vector<128x16xf32>
    %28 = tpu.matmul %27, %20, %cst_17 {dimension_numbers = #tpu.dot_dimension_numbers<[1], [0], [0], [1], [0, 0, 1, 1], [], []>} : vector<128x32xbf16>, vector<32x16xbf16>, vector<128x16xf32> -> vector<128x16xf32>
    %29 = vector.broadcast %21 : vector<1x16xf32> to vector<128x16xf32>
    %30 = arith.addf %28, %29 : vector<128x16xf32>
    %cst_18 = arith.constant 0.000000e+00 : f32
    %31 = vector.broadcast %cst_18 : f32 to vector<128x16xf32>
    %32 = arith.cmpf oge, %30, %31 : vector<128x16xf32>
    %33 = vector.broadcast %22 : f32 to vector<128x16xf32>
    %34 = arith.mulf %33, %30 : vector<128x16xf32>
    %35 = arith.select %32, %30, %34 : vector<128x16xi1>, vector<128x16xf32>
    %36 = arith.truncf %35 : vector<128x16xf32> to vector<128x16xbf16>
    %c0_19 = arith.constant 0 : index
    %c0_20 = arith.constant 0 : index
    %37 = vector.load %arg7[%c0_19, %c0_20] : memref<16x8xbf16, #tpu.memory_space<vmem>>, vector<16x8xbf16>
    %c0_21 = arith.constant 0 : index
    %c0_22 = arith.constant 0 : index
    %38 = vector.load %arg8[%c0_21, %c0_22] : memref<16x8xbf16, #tpu.memory_space<vmem>>, vector<16x8xbf16>
    %c0_23 = arith.constant 0 : index
    %c0_24 = arith.constant 0 : index
    %39 = vector.load %arg9[%c0_23, %c0_24] : memref<1x8xf32, #tpu.memory_space<vmem>>, vector<1x8xf32>
    %c2 = arith.constant 2 : index
    %40 = memref.load %arg10[%c2] : memref<3xf32, #tpu.memory_space<smem>>
    %cst_25 = arith.constant dense<0.000000e+00> : vector<128x8xf32>
    %41 = tpu.matmul %36, %37, %cst_25 {dimension_numbers = #tpu.dot_dimension_numbers<[1], [0], [0], [1], [0, 0, 1, 1], [], []>} : vector<128x16xbf16>, vector<16x8xbf16>, vector<128x8xf32> -> vector<128x8xf32>
    %42 = vector.shape_cast %41 : vector<128x8xf32> to vector<8x16x8xf32>
    %43 = arith.truncf %42 : vector<8x16x8xf32> to vector<8x16x8xbf16>
    "tpu.trace_start"() <{level = 10 : i32, message = "bij,bjc->bic"}> : () -> ()
    %cst_26 = arith.constant dense<0.000000e+00> : vector<8x16x8xf32>
    %44 = tpu.matmul %0, %43, %cst_26 {dimension_numbers = #tpu.dot_dimension_numbers<[2], [1], [1], [2], [0, 0, 0, 1, 1, 2], [0], [0]>} : vector<8x16x16xbf16>, vector<8x16x8xbf16>, vector<8x16x8xf32> -> vector<8x16x8xf32>
    "tpu.trace_stop"() : () -> ()
    %45 = vector.shape_cast %44 : vector<8x16x8xf32> to vector<128x8xf32>
    %cst_27 = arith.constant dense<0.000000e+00> : vector<128x8xf32>
    %46 = tpu.matmul %36, %38, %cst_27 {dimension_numbers = #tpu.dot_dimension_numbers<[1], [0], [0], [1], [0, 0, 1, 1], [], []>} : vector<128x16xbf16>, vector<16x8xbf16>, vector<128x8xf32> -> vector<128x8xf32>
    %47 = arith.addf %45, %46 : vector<128x8xf32>
    %48 = vector.broadcast %39 : vector<1x8xf32> to vector<128x8xf32>
    %49 = arith.addf %47, %48 : vector<128x8xf32>
    %cst_28 = arith.constant 0.000000e+00 : f32
    %50 = vector.broadcast %cst_28 : f32 to vector<128x8xf32>
    %51 = arith.cmpf oge, %49, %50 : vector<128x8xf32>
    %52 = vector.broadcast %40 : f32 to vector<128x8xf32>
    %53 = arith.mulf %52, %49 : vector<128x8xf32>
    %54 = arith.select %51, %49, %53 : vector<128x8xi1>, vector<128x8xf32>
    %55 = vector.shape_cast %54 : vector<128x8xf32> to vector<8x16x8xf32>
    %c0_29 = arith.constant 0 : index
    %c0_30 = arith.constant 0 : index
    %c0_31 = arith.constant 0 : index
    %56 = vector.load %arg11[%c0_29, %c0_30, %c0_31] : memref<8x16x8xf32, #tpu.memory_space<vmem>>, vector<8x16x8xf32>
    tpu.vector_store %arg11[%c0_29, %c0_30, %c0_31], %55 {strides = array<i32>} : memref<8x16x8xf32, #tpu.memory_space<vmem>>, vector<8x16x8xf32>,
    return
  }
  func.func @transform_0(%arg0: i32) -> (i32, i32, i32) {
    %c0_i32 = arith.constant 0 : i32
    %c0_i32_0 = arith.constant 0 : i32
    %c0_i32_1 = arith.constant 0 : i32
    return %arg0, %c0_i32, %c0_i32_0 : i32, i32, i32
  }
  func.func @transform_1(%arg0: i32) -> (i32, i32, i32) {
    %c0_i32 = arith.constant 0 : i32
    %c0_i32_0 = arith.constant 0 : i32
    %c0_i32_1 = arith.constant 0 : i32
    return %arg0, %c0_i32, %c0_i32_0 : i32, i32, i32
  }
  func.func @transform_2(%arg0: i32) -> (i32, i32) {
    %c0_i32 = arith.constant 0 : i32
    %c0_i32_0 = arith.constant 0 : i32
    %c0_i32_1 = arith.constant 0 : i32
    return %c0_i32, %c0_i32_0 : i32, i32
  }
  func.func @transform_3(%arg0: i32) -> (i32, i32) {
    %c0_i32 = arith.constant 0 : i32
    %c0_i32_0 = arith.constant 0 : i32
    %c0_i32_1 = arith.constant 0 : i32
    return %c0_i32, %c0_i32_0 : i32, i32
  }
  func.func @transform_4(%arg0: i32) -> (i32, i32) {
    %c0_i32 = arith.constant 0 : i32
    %c0_i32_0 = arith.constant 0 : i32
    %c0_i32_1 = arith.constant 0 : i32
    return %c0_i32, %c0_i32_0 : i32, i32
  }
  func.func @transform_5(%arg0: i32) -> (i32, i32) {
    %c0_i32 = arith.constant 0 : i32
    %c0_i32_0 = arith.constant 0 : i32
    %c0_i32_1 = arith.constant 0 : i32
    return %c0_i32, %c0_i32_0 : i32, i32
  }
  func.func @transform_6(%arg0: i32) -> (i32, i32) {
    %c0_i32 = arith.constant 0 : i32
    %c0_i32_0 = arith.constant 0 : i32
    %c0_i32_1 = arith.constant 0 : i32
    return %c0_i32, %c0_i32_0 : i32, i32
  }
  func.func @transform_7(%arg0: i32) -> (i32, i32) {
    %c0_i32 = arith.constant 0 : i32
    %c0_i32_0 = arith.constant 0 : i32
    %c0_i32_1 = arith.constant 0 : i32
    return %c0_i32, %c0_i32_0 : i32, i32
  }
  func.func @transform_8(%arg0: i32) -> (i32, i32) {
    %c0_i32 = arith.constant 0 : i32
    %c0_i32_0 = arith.constant 0 : i32
    %c0_i32_1 = arith.constant 0 : i32
    return %c0_i32, %c0_i32_0 : i32, i32
  }
  func.func @transform_9(%arg0: i32) -> i32 {
    %c0_i32 = arith.constant 0 : i32
    %c0_i32_0 = arith.constant 0 : i32
    return %c0_i32 : i32
  }
  func.func @transform_10(%arg0: i32) -> (i32, i32, i32) {
    %c0_i32 = arith.constant 0 : i32
    %c0_i32_0 = arith.constant 0 : i32
    %c0_i32_1 = arith.constant 0 : i32
    return %arg0, %c0_i32, %c0_i32_0 : i32, i32, i32
  }
}

module attributes {stable_mosaic.version = 11 : i64} {
  func.func @_head_kernel(%arg0: i32, %arg1: memref<8x128xf32, #tpu.memory_space<vmem>>, %arg2: memref<128x16xbf16, #tpu.memory_space<vmem>>, %arg3: memref<1x16xf32, #tpu.memory_space<vmem>>, %arg4: memref<16x1xbf16, #tpu.memory_space<vmem>>, %arg5: memref<1x1xf32, #tpu.memory_space<vmem>>, %arg6: memref<8x1xf32, #tpu.memory_space<vmem>>) attributes {dimension_semantics = [#tpu.dimension_semantics<parallel>], iteration_bounds = array<i64: 2>, scalar_prefetch = 0 : i64, scratch_operands = 0 : i64, tpu.core_type = #tpu.core_type<tc>, window_params = [{transform_indices = @transform_0, window_bounds = array<i64: 8, 128>}, {pipeline_mode = #tpu.pipeline_mode<synchronous>, transform_indices = @transform_1, window_bounds = array<i64: 128, 16>}, {pipeline_mode = #tpu.pipeline_mode<synchronous>, transform_indices = @transform_2, window_bounds = array<i64: 1, 16>}, {pipeline_mode = #tpu.pipeline_mode<synchronous>, transform_indices = @transform_3, window_bounds = array<i64: 16, 1>}, {pipeline_mode = #tpu.pipeline_mode<synchronous>, transform_indices = @transform_4, window_bounds = array<i64: 1, 1>}, {transform_indices = @transform_5, window_bounds = array<i64: 8, 1>}]} {
    %c0 = arith.constant 0 : index
    %c0_0 = arith.constant 0 : index
    %0 = vector.load %arg1[%c0, %c0_0] : memref<8x128xf32, #tpu.memory_space<vmem>>, vector<8x128xf32>
    %c0_1 = arith.constant 0 : index
    %c0_2 = arith.constant 0 : index
    %1 = vector.load %arg2[%c0_1, %c0_2] : memref<128x16xbf16, #tpu.memory_space<vmem>>, vector<128x16xbf16>
    %c0_3 = arith.constant 0 : index
    %c0_4 = arith.constant 0 : index
    %2 = vector.load %arg3[%c0_3, %c0_4] : memref<1x16xf32, #tpu.memory_space<vmem>>, vector<1x16xf32>
    %c0_5 = arith.constant 0 : index
    %c0_6 = arith.constant 0 : index
    %3 = vector.load %arg4[%c0_5, %c0_6] : memref<16x1xbf16, #tpu.memory_space<vmem>>, vector<16x1xbf16>
    %c0_7 = arith.constant 0 : index
    %c0_8 = arith.constant 0 : index
    %4 = vector.load %arg5[%c0_7, %c0_8] : memref<1x1xf32, #tpu.memory_space<vmem>>, vector<1x1xf32>
    %5 = arith.truncf %0 : vector<8x128xf32> to vector<8x128xbf16>
    %cst = arith.constant dense<0.000000e+00> : vector<8x16xf32>
    %6 = tpu.matmul %5, %1, %cst {dimension_numbers = #tpu.dot_dimension_numbers<[1], [0], [0], [1], [0, 0, 1, 1], [], []>} : vector<8x128xbf16>, vector<128x16xbf16>, vector<8x16xf32> -> vector<8x16xf32>
    %7 = vector.broadcast %2 : vector<1x16xf32> to vector<8x16xf32>
    %8 = arith.addf %6, %7 : vector<8x16xf32>
    %cst_9 = arith.constant 0.000000e+00 : f32
    %9 = vector.broadcast %cst_9 : f32 to vector<8x16xf32>
    %10 = arith.maximumf %8, %9 : vector<8x16xf32>
    %11 = arith.truncf %10 : vector<8x16xf32> to vector<8x16xbf16>
    %cst_10 = arith.constant dense<0.000000e+00> : vector<8x1xf32>
    %12 = tpu.matmul %11, %3, %cst_10 {dimension_numbers = #tpu.dot_dimension_numbers<[1], [0], [0], [1], [0, 0, 1, 1], [], []>} : vector<8x16xbf16>, vector<16x1xbf16>, vector<8x1xf32> -> vector<8x1xf32>
    %13 = vector.broadcast %4 : vector<1x1xf32> to vector<8x1xf32>
    %14 = arith.addf %12, %13 : vector<8x1xf32>
    %c0_11 = arith.constant 0 : index
    %c0_12 = arith.constant 0 : index
    %15 = vector.load %arg6[%c0_11, %c0_12] : memref<8x1xf32, #tpu.memory_space<vmem>>, vector<8x1xf32>
    tpu.vector_store %arg6[%c0_11, %c0_12], %14 {strides = array<i32>} : memref<8x1xf32, #tpu.memory_space<vmem>>, vector<8x1xf32>,
    return
  }
  func.func @transform_0(%arg0: i32) -> (i32, i32) {
    %c0_i32 = arith.constant 0 : i32
    %c0_i32_0 = arith.constant 0 : i32
    return %arg0, %c0_i32 : i32, i32
  }
  func.func @transform_1(%arg0: i32) -> (i32, i32) {
    %c0_i32 = arith.constant 0 : i32
    %c0_i32_0 = arith.constant 0 : i32
    %c0_i32_1 = arith.constant 0 : i32
    return %c0_i32, %c0_i32_0 : i32, i32
  }
  func.func @transform_2(%arg0: i32) -> (i32, i32) {
    %c0_i32 = arith.constant 0 : i32
    %c0_i32_0 = arith.constant 0 : i32
    %c0_i32_1 = arith.constant 0 : i32
    return %c0_i32, %c0_i32_0 : i32, i32
  }
  func.func @transform_3(%arg0: i32) -> (i32, i32) {
    %c0_i32 = arith.constant 0 : i32
    %c0_i32_0 = arith.constant 0 : i32
    %c0_i32_1 = arith.constant 0 : i32
    return %c0_i32, %c0_i32_0 : i32, i32
  }
  func.func @transform_4(%arg0: i32) -> (i32, i32) {
    %c0_i32 = arith.constant 0 : i32
    %c0_i32_0 = arith.constant 0 : i32
    %c0_i32_1 = arith.constant 0 : i32
    return %c0_i32, %c0_i32_0 : i32, i32
  }
  func.func @transform_5(%arg0: i32) -> (i32, i32) {
    %c0_i32 = arith.constant 0 : i32
    %c0_i32_0 = arith.constant 0 : i32
    return %arg0, %c0_i32 : i32, i32
  }
}

</mosaic_0001>

<llo_original>
// kernel: connectome_gnn_forward.3
$region0: #{connectome_gnn_forward.3}
  #allocation0 [shape = 'u32[]', space=smem, size = 0x4, offset = 0x4, fixed_abs, tag = 'smem constant byte address 0x4 - core index']
  #allocation1 [shape = 'u32[72,128]{1,0:T(1,128)}', space=vmem, size = 0x9000, scoped, tag = 'internal scratch']
  #allocation2 [shape = 'f32[1,1]{1,0:T(1,128)S(1)}', space=vmem, size = 0x200, scoped, tag = 'scoped memory for connectome_gnn_forward.3']
  %s0 = inlined_call_operand.vmem [shape: f32[16,128], index: 0, kind: input, shape index: {}]
  %s1 = inlined_call_operand.vmem [shape: bf16[128,16], index: 1, kind: input, shape index: {}]
  %s2 = inlined_call_operand.vmem [shape: f32[1,16], index: 2, kind: input, shape index: {}]
  %s3 = inlined_call_operand.vmem [shape: bf16[16,1], index: 3, kind: input, shape index: {}]
  %s4 = inlined_call_operand.<no memory space> [shape: f32[1,1], index: 4, kind: input, shape index: {}]
  %s5 = inlined_call_operand.vmem [shape: f32[16,1], index: 5, kind: output, shape index: {}]
  %s6 = sld [smem:[#allocation0]]
  $region53: #{connectome_gnn_forward.3} parent=0
    _
  %s8 = ssub.s32 1, %s6
  %s9 = scalar_select 0, %s8, %s6
  %v10 = vstv %s4
  %11 = vst [vmem:[#allocation2] sm:$0x1] %v10
  loop: start=0, step=1, limit=4
  $region2: #{connectome_gnn_forward.3} parent=0 // loop_pre_header
    _
  $region3: #{connectome_gnn_forward.3} parent=0 // loop_header
    %s13 = sphi 0, %s17
    %p14 = scmp.ge.s32.totalorder %s13, 4
    %s23 = sphi 0, %s25
    %s26 = sphi 0, %s23
    %s27 = sphi 0, %s26
    %s43 = sphi 0, %s27
    %s47 = sphi 0, %s47
    %s49 = sphi 0, %s47
    %s50 = sphi 0, %s49
    %s64 = sphi 0, %s50
    %s68 = sphi 0, %s68
    %s70 = sphi 0, %s68
    %s71 = sphi 0, %s70
    %s85 = sphi 0, %s71
    %s89 = sphi 0, %s89
    %s91 = sphi 0, %s89
    %s92 = sphi 0, %s91
    %s106 = sphi 0, %s92
    %s110 = sphi 0, %s110
    %s112 = sphi 0, %s110
    %s113 = sphi 0, %s112
    %s127 = sphi 0, %s113
    %s133 = sphi 0, %s135
    %s136 = sphi 0, %s133
    %s137 = sphi 0, %s136
    %s153 = sphi 0, %s137
  $region4: #{connectome_gnn_forward.3} parent=0 // loop_header_branch
    %16 = sbr.rel (%p14) target = $region8
  $region5: #{connectome_gnn_forward.3} parent=0 // loop_body
    %s18 = ssub.s32 %s13, 1
    %s19 = ssub.s32 %s13, 2
    %s20 = sadd.s32 %s13, 1
    %s21 = ssub.s32 %s13, %s20
    %p22 = scmp.eq.s32.totalorder %s21, 0
    %s24 = sadd.s32 %s23, 1
    %s25 = scalar_select %p22, %s23, %s24
    %p28 = pneg %p22
    %p29 = scmp.eq.s32.totalorder %s13, 1
    %p30 = por %p28, %p29
    %p31 = scmp.ne.s32.totalorder %s23, %s26
    %p32 = scmp.eq.s32.totalorder %s13, 0
    %p33 = por %p31, %p32
    %p34 = scmp.ne.s32.totalorder %s23, %s26
    %p35 = scmp.eq.s32.totalorder %s18, 1
    %p36 = por %p34, %p35
    %p37 = scmp.ne.s32.totalorder %s26, %s27
    %p38 = scmp.eq.s32.totalorder %s18, 0
    %p39 = por %p37, %p38
    %p40 = scmp.ne.s32.totalorder %s26, %s27
    %p41 = scmp.eq.s32.totalorder %s19, 1
    %p42 = por %p40, %p41
    %p44 = scmp.ne.s32.totalorder %s27, %s43
    %p45 = scmp.eq.s32.totalorder %s19, 0
    %p46 = por %p44, %p45
    %s48 = sadd.s32 %s47, 1
    %p51 = scmp.eq.s32.totalorder %s13, 1
    %p52 = scmp.ne.s32.totalorder %s47, %s49
    %p53 = scmp.eq.s32.totalorder %s13, 0
    %p54 = por %p52, %p53
    %p55 = scmp.ne.s32.totalorder %s47, %s49
    %p56 = scmp.eq.s32.totalorder %s18, 1
    %p57 = por %p55, %p56
    %p58 = scmp.ne.s32.totalorder %s49, %s50
    %p59 = scmp.eq.s32.totalorder %s18, 0
    %p60 = por %p58, %p59
    %p61 = scmp.ne.s32.totalorder %s49, %s50
    %p62 = scmp.eq.s32.totalorder %s19, 1
    %p63 = por %p61, %p62
    %p65 = scmp.ne.s32.totalorder %s50, %s64
    %p66 = scmp.eq.s32.totalorder %s19, 0
    %p67 = por %p65, %p66
    %s69 = sadd.s32 %s68, 1
    %p72 = scmp.eq.s32.totalorder %s13, 1
    %p73 = scmp.ne.s32.totalorder %s68, %s70
    %p74 = scmp.eq.s32.totalorder %s13, 0
    %p75 = por %p73, %p74
    %p76 = scmp.ne.s32.totalorder %s68, %s70
    %p77 = scmp.eq.s32.totalorder %s18, 1
    %p78 = por %p76, %p77
    %p79 = scmp.ne.s32.totalorder %s70, %s71
    %p80 = scmp.eq.s32.totalorder %s18, 0
    %p81 = por %p79, %p80
    %p82 = scmp.ne.s32.totalorder %s70, %s71
    %p83 = scmp.eq.s32.totalorder %s19, 1
    %p84 = por %p82, %p83
    %p86 = scmp.ne.s32.totalorder %s71, %s85
    %p87 = scmp.eq.s32.totalorder %s19, 0
    %p88 = por %p86, %p87
    %s90 = sadd.s32 %s89, 1
    %p93 = scmp.eq.s32.totalorder %s13, 1
    %p94 = scmp.ne.s32.totalorder %s89, %s91
    %p95 = scmp.eq.s32.totalorder %s13, 0
    %p96 = por %p94, %p95
    %p97 = scmp.ne.s32.totalorder %s89, %s91
    %p98 = scmp.eq.s32.totalorder %s18, 1
    %p99 = por %p97, %p98
    %p100 = scmp.ne.s32.totalorder %s91, %s92
    %p101 = scmp.eq.s32.totalorder %s18, 0
    %p102 = por %p100, %p101
    %p103 = scmp.ne.s32.totalorder %s91, %s92
    %p104 = scmp.eq.s32.totalorder %s19, 1
    %p105 = por %p103, %p104
    %p107 = scmp.ne.s32.totalorder %s92, %s106
    %p108 = scmp.eq.s32.totalorder %s19, 0
    %p109 = por %p107, %p108
    %s111 = sadd.s32 %s110, 1
    %p114 = scmp.eq.s32.totalorder %s13, 1
    %p115 = scmp.ne.s32.totalorder %s110, %s112
    %p116 = scmp.eq.s32.totalorder %s13, 0
    %p117 = por %p115, %p116
    %p118 = scmp.ne.s32.totalorder %s110, %s112
    %p119 = scmp.eq.s32.totalorder %s18, 1
    %p120 = por %p118, %p119
    %p121 = scmp.ne.s32.totalorder %s112, %s113
    %p122 = scmp.eq.s32.totalorder %s18, 0
    %p123 = por %p121, %p122
    %p124 = scmp.ne.s32.totalorder %s112, %s113
    %p125 = scmp.eq.s32.totalorder %s19, 1
    %p126 = por %p124, %p125
    %p128 = scmp.ne.s32.totalorder %s113, %s127
    %p129 = scmp.eq.s32.totalorder %s19, 0
    %p130 = por %p128, %p129
    %s131 = ssub.s32 %s13, %s20
    %p132 = scmp.eq.s32.totalorder %s131, 0
    %s134 = sadd.s32 %s133, 1
    %s135 = scalar_select %p132, %s133, %s134
    %p138 = pneg %p132
    %p139 = scmp.eq.s32.totalorder %s13, 1
    %p140 = por %p138, %p139
    %p141 = scmp.ne.s32.totalorder %s133, %s136
    %p142 = scmp.eq.s32.totalorder %s13, 0
    %p143 = por %p141, %p142
    %p144 = scmp.ne.s32.totalorder %s133, %s136
    %p145 = scmp.eq.s32.totalorder %s18, 1
    %p146 = por %p144, %p145
    %p147 = scmp.ne.s32.totalorder %s136, %s137
    %p148 = scmp.eq.s32.totalorder %s18, 0
    %p149 = por %p147, %p148
    %p150 = scmp.ne.s32.totalorder %s136, %s137
    %p151 = scmp.eq.s32.totalorder %s19, 1
    %p152 = por %p150, %p151
    %p154 = scmp.ne.s32.totalorder %s137, %s153
    %p155 = scmp.eq.s32.totalorder %s19, 0
    %p156 = por %p154, %p155
    %p157 = scmp.le.s32.totalorder 1, %s13
    %p158 = scmp.lt.s32.totalorder %s13, 3
    %p159 = pnand %p157, %p158
    %p160 = pneg %p159
    // Predicated region
    $region9: #{connectome_gnn_forward.3} parent=5 // pred_check
      _
    $region10: #{connectome_gnn_forward.3} parent=5 // pred_check_branch
      %162 = sbr.rel (%p159) target = $region12
    $region11: #{connectome_gnn_forward.3} parent=5 // pred_region
      %s163 = ssub.s32 %s13, 1
      // Predicated region
      $region13: #{connectome_gnn_forward.3} parent=11 // pred_check
        %p164 = pneg %p60
      $region14: #{connectome_gnn_forward.3} parent=11 // pred_check_branch
        %166 = sbr.rel (%p164) target = $region16
      $region15: #{connectome_gnn_forward.3} parent=11 // pred_region
        _
      $region16: #{connectome_gnn_forward.3} parent=11 // pred_fallthru
        _
      // Predicated region
      $region17: #{connectome_gnn_forward.3} parent=11 // pred_check
        %p167 = pneg %p81
      $region18: #{connectome_gnn_forward.3} parent=11 // pred_check_branch
        %169 = sbr.rel (%p167) target = $region20
      $region19: #{connectome_gnn_forward.3} parent=11 // pred_region
        _
      $region20: #{connectome_gnn_forward.3} parent=11 // pred_fallthru
        _
      // Predicated region
      $region21: #{connectome_gnn_forward.3} parent=11 // pred_check
        %p170 = pneg %p102
      $region22: #{connectome_gnn_forward.3} parent=11 // pred_check_branch
        %172 = sbr.rel (%p170) target = $region24
      $region23: #{connectome_gnn_forward.3} parent=11 // pred_region
        _
      $region24: #{connectome_gnn_forward.3} parent=11 // pred_fallthru
        _
      // Predicated region
      $region25: #{connectome_gnn_forward.3} parent=11 // pred_check
        %p173 = pneg %p123
      $region26: #{connectome_gnn_forward.3} parent=11 // pred_check_branch
        %175 = sbr.rel (%p173) target = $region28
      $region27: #{connectome_gnn_forward.3} parent=11 // pred_region
        _
      $region28: #{connectome_gnn_forward.3} parent=11 // pred_fallthru
        _
    $region12: #{connectome_gnn_forward.3} parent=5 // pred_fallthru
      _
    %p176 = scmp.lt.s32.totalorder %s13, 2
    // Predicated region
    $region29: #{connectome_gnn_forward.3} parent=5 // pred_check
      %p177 = pneg %p176
    $region30: #{connectome_gnn_forward.3} parent=5 // pred_check_branch
      %179 = sbr.rel (%p177) target = $region32
    $region31: #{connectome_gnn_forward.3} parent=5 // pred_region
      // Predicated region
      $region33: #{connectome_gnn_forward.3} parent=31 // pred_check
        %p180 = pneg %p33
      $region34: #{connectome_gnn_forward.3} parent=31 // pred_check_branch
        %182 = sbr.rel (%p180) target = $region36
      $region35: #{connectome_gnn_forward.3} parent=31 // pred_region
        %p183 = scmp.lt.s32.totalorder %s13, 1
        %s184 = scalar_select %p183, %s13, 1
        %s185 = smul.addr %s184, 8
        %s186 = scalar_lea.vmem %s0, %s185
      $region36: #{connectome_gnn_forward.3} parent=31 // pred_fallthru
        _
    $region32: #{connectome_gnn_forward.3} parent=5 // pred_fallthru
      _
    %p187 = scmp.le.s32.totalorder 1, %s13
    %p188 = scmp.lt.s32.totalorder %s13, 3
    %p189 = pnand %p187, %p188
    %p190 = pneg %p189
    // Predicated region
    $region37: #{connectome_gnn_forward.3} parent=5 // pred_check
      _
    $region38: #{connectome_gnn_forward.3} parent=5 // pred_check_branch
      %192 = sbr.rel (%p189) target = $region40
    $region39: #{connectome_gnn_forward.3} parent=5 // pred_region
      %s193 = ssub.s32 %s13, 1
      %p194 = scmp.lt.s32.totalorder %s18, 1
      %s195 = scalar_select %p194, %s18, 1
      %s196 = smul.addr %s195, 8
      %s197 = scalar_lea.vmem %s0, %s196
      %p198 = pneg %p39
      %p199 = pneg %p36
      %p200 = pneg %p60
      %p201 = pneg %p57
      %p202 = pneg %p81
      %p203 = pneg %p78
      %p204 = pneg %p102
      %p205 = pneg %p99
      %p206 = pneg %p123
      %p207 = pneg %p120
      %p208 = pneg %p149
      %p209 = pneg %p146
      %p210 = scmp.lt.s32.totalorder %s18, 1
      %s211 = scalar_select %p210, %s18, 1
      %s212 = smul.addr %s211, 8
      %s213 = scalar_lea.vmem %s5, %s212
      %p214 = scmp.lt.s32.totalorder %s18, 1
      %s215 = scalar_select %p214, %s18, 1
      %s216 = smul.addr %s215, 8
      %s217 = scalar_lea.vmem %s0, %s216
      %p218 = scmp.lt.s32.totalorder %s18, 1
      %s219 = scalar_select %p218, %s18, 1
      %s220 = smul.addr %s219, 8
      %s221 = scalar_lea.vmem %s5, %s220
      %v223 = vld [vmem:[%s217] sm:$0xff]
      %v224 = vld [vmem:[%s1] sm:$0xf]
      %v225 = vld [vmem:[%s1 + $0x4] sm:$0xf]
      %v226 = vld [vmem:[%s1 + $0x8] sm:$0xf]
      %v227 = vld [vmem:[%s1 + $0xc] sm:$0xf]
      %v228 = vld [vmem:[%s1 + $0x10] sm:$0xf]
      %v229 = vld [vmem:[%s1 + $0x14] sm:$0xf]
      %v230 = vld [vmem:[%s1 + $0x18] sm:$0xf]
      %v231 = vld [vmem:[%s1 + $0x1c] sm:$0xf]
      %v232 = vld [vmem:[%s1 + $0x20] sm:$0xf]
      %v233 = vld [vmem:[%s1 + $0x24] sm:$0xf]
      %v234 = vld [vmem:[%s1 + $0x28] sm:$0xf]
      %v235 = vld [vmem:[%s1 + $0x2c] sm:$0xf]
      %v236 = vld [vmem:[%s1 + $0x30] sm:$0xf]
      %v237 = vld [vmem:[%s1 + $0x34] sm:$0xf]
      %v238 = vld [vmem:[%s1 + $0x38] sm:$0xf]
      %v239 = vld [vmem:[%s1 + $0x3c] sm:$0xf]
      %v240 = vld [vmem:[%s2] sm:$0x1]
      %v241 = vld [vmem:[%s3] sm:$0xf]
      %v242 = vld [vmem:[%s3 + $0x4] sm:$0xf]
      %v243 = vld [vmem:[#allocation2] sm:$0x1]
      %v244 = vpack.c.bf16 %v223, %v223
      %v246 = vperm.slane %v240, 0
      %v264 = vunpack.c.l.b16 %v224
      %v265 = vunpack.c.l.b16 %v225
      %v266 = vunpack.c.l.b16 %v226
      %v267 = vunpack.c.l.b16 %v227
      %v268 = vunpack.c.l.b16 %v228
      %v269 = vunpack.c.l.b16 %v229
      %v270 = vunpack.c.l.b16 %v230
      %v271 = vunpack.c.l.b16 %v231
      %v272 = vunpack.c.l.b16 %v232
      %v273 = vunpack.c.l.b16 %v233
      %v274 = vunpack.c.l.b16 %v234
      %v275 = vunpack.c.l.b16 %v235
      %v276 = vunpack.c.l.b16 %v236
      %v277 = vunpack.c.l.b16 %v237
      %v278 = vunpack.c.l.b16 %v238
      %v279 = vunpack.c.l.b16 %v239
      %v280 = vpack.c.b16 %v265, %v264
      %v281 = vpack.c.b16 %v267, %v266
      %v282 = vpack.c.b16 %v269, %v268
      %v283 = vpack.c.b16 %v271, %v270
      %v284 = vpack.c.b16 %v273, %v272
      %v285 = vpack.c.b16 %v275, %v274
      %v286 = vpack.c.b16 %v277, %v276
      %v287 = vpack.c.b16 %v279, %v278
      %296 = vmatpush.bf16.msra.mxu0 %v287
      %297 = vmatpush.bf16.msra.mxu0 %v286
      %298 = vmatpush.bf16.msra.mxu0 %v285
      %299 = vmatpush.bf16.msra.mxu0 %v284
      %300 = vmatpush.bf16.msra.mxu0 %v283
      %301 = vmatpush.bf16.msra.mxu0 %v282
      %302 = vmatpush.bf16.msra.mxu0 %v281
      %303 = vmatpush.bf16.msra.mxu0 %v280
      %304 = vmatmul.bf16.gmra.mxu0 %v244
      %v305 = vpop.f32.mrf.mxu0
      %v306 = vadd.f32 %v246, %v305
      %v307 = vpop.f32.mrf.mxu0
      %308 = vdwg.mxu0
      %v309 = vmax.f32 %v306, 0.0
      %v310 = vpack.c.bf16 %v309, %v309
      %v312 = vperm.slane %v243, 0
      %v316 = vunpack.c.l.b16 %v241
      %v317 = vunpack.c.l.b16 %v242
      %v318 = vpack.c.b16 %v317, %v316
      %vm320 = vcmask 130048
      %v322 = vsel %vm320, %v310, 0
      %324 = vmatpush.bf16.msra.mxu0 0
      %325 = vmatpush.bf16.msra.mxu0 0
      %326 = vmatpush.bf16.msra.mxu0 0
      %327 = vmatpush.bf16.msra.mxu0 0
      %328 = vmatpush.bf16.msra.mxu0 0
      %329 = vmatpush.bf16.msra.mxu0 0
      %330 = vmatpush.bf16.msra.mxu0 0
      %331 = vmatpush.bf16.msra.mxu0 %v318
      %332 = vmatmul.bf16.gmra.mxu0 %v322
      %v333 = vpop.f32.mrf.mxu0
      %v334 = vadd.f32 %v312, %v333
      %v335 = vpop.f32.mrf.mxu0
      %336 = vdwg.mxu0
      %vm337 = vcmask 7168
      %338 = vst.msk [vmem:[%s221] sm:$0xff] %vm337, %v334
      %p339 = scmp.lt.s32.totalorder %s18, 1
      %s340 = scalar_select %p339, %s18, 1
      %s341 = smul.addr %s340, 8
      %s342 = scalar_lea.vmem %s5, %s341
      // Predicated region
      $region41: #{connectome_gnn_forward.3} parent=39 // pred_check
        %p343 = pneg %p146
      $region42: #{connectome_gnn_forward.3} parent=39 // pred_check_branch
        %345 = sbr.rel (%p343) target = $region44
      $region43: #{connectome_gnn_forward.3} parent=39 // pred_region
        _
      $region44: #{connectome_gnn_forward.3} parent=39 // pred_fallthru
        _
    $region40: #{connectome_gnn_forward.3} parent=5 // pred_fallthru
      _
    %p346 = scmp.le.s32.totalorder 2, %s13
    // Predicated region
    $region45: #{connectome_gnn_forward.3} parent=5 // pred_check
      %p347 = pneg %p346
    $region46: #{connectome_gnn_forward.3} parent=5 // pred_check_branch
      %349 = sbr.rel (%p347) target = $region48
    $region47: #{connectome_gnn_forward.3} parent=5 // pred_region
      %s350 = ssub.s32 %s13, 2
      // Predicated region
      $region49: #{connectome_gnn_forward.3} parent=47 // pred_check
        %p351 = pneg %p152
      $region50: #{connectome_gnn_forward.3} parent=47 // pred_check_branch
        %353 = sbr.rel (%p351) target = $region52
      $region51: #{connectome_gnn_forward.3} parent=47 // pred_region
        %p354 = scmp.lt.s32.totalorder %s19, 1
        %s355 = scalar_select %p354, %s19, 1
        %s356 = smul.addr %s355, 8
        %s357 = scalar_lea.vmem %s5, %s356
      $region52: #{connectome_gnn_forward.3} parent=47 // pred_fallthru
        _
    $region48: #{connectome_gnn_forward.3} parent=5 // pred_fallthru
      _
  $region6: #{connectome_gnn_forward.3} parent=0 // loop_footer
    %s17 = sadd.s32 1, %s13
  $region7: #{connectome_gnn_forward.3} parent=0 // loop_footer_branch
    %12 = sbr.rel target = $region3
  $region8: #{connectome_gnn_forward.3} parent=0 // loop_exit
    _

// kernel: connectome_gnn_forward.2
$region0: #{connectome_gnn_forward.2}
  #allocation0 [shape = 'u32[]', space=smem, size = 0x4, offset = 0x4, fixed_abs, tag = 'smem constant byte address 0x4 - core index']
  #allocation1 [shape = 'u32[72,128]{1,0:T(1,128)}', space=vmem, size = 0x9000, scoped, tag = 'internal scratch']
  %s0 = inlined_call_operand.vmem [shape: bf16[16,16,8], index: 0, kind: input, shape index: {}]
  %s1 = inlined_call_operand.vmem [shape: bf16[16,16,16], index: 1, kind: input, shape index: {}]
  %s2 = inlined_call_operand.vmem [shape: bf16[16,16], index: 2, kind: input, shape index: {}]
  %s3 = inlined_call_operand.vmem [shape: f32[1,16], index: 3, kind: input, shape index: {}]
  %s4 = inlined_call_operand.vmem [shape: bf16[32,16], index: 4, kind: input, shape index: {}]
  %s5 = inlined_call_operand.vmem [shape: f32[1,16], index: 5, kind: input, shape index: {}]
  %s6 = inlined_call_operand.vmem [shape: bf16[16,8], index: 6, kind: input, shape index: {}]
  %s7 = inlined_call_operand.vmem [shape: bf16[16,8], index: 7, kind: input, shape index: {}]
  %s8 = inlined_call_operand.vmem [shape: f32[1,8], index: 8, kind: input, shape index: {}]
  %s9 = inlined_call_operand.vmem [shape: f32[3], index: 9, kind: input, shape index: {}]
  %s10 = inlined_call_operand.vmem [shape: f32[16,16,8], index: 10, kind: output, shape index: {}]
  %s11 = sld [smem:[#allocation0]]
  $region77: #{connectome_gnn_forward.2} parent=0
    _
  %s13 = ssub.s32 1, %s11
  %s14 = scalar_select 0, %s13, %s11
  $region1: #{connectome_gnn_forward.2} parent=0
    #allocation2 [shape = 'u8[512]{0}', space=smem, size = 0x200, scoped, tag = 'input window, operand 9, single buffered']
    #allocation3 [shape = 's32[2]{0}', space=sflag, size = 0x8, scoped, tag = 'scoped memory for connectome_gnn_forward.2']
    %15 = vsyncpa [#allocation3], 0
    loop: start=0, step=1, limit=4
    $region2: #{connectome_gnn_forward.2} parent=1 // loop_pre_header
      _
    $region3: #{connectome_gnn_forward.2} parent=1 // loop_header
      %s17 = sphi 0, %s21
      %p18 = scmp.ge.s32.totalorder %s17, 4
      %s27 = sphi 0, %s29
      %s30 = sphi 0, %s27
      %s31 = sphi 0, %s30
      %s47 = sphi 0, %s31
      %s53 = sphi 0, %s55
      %s56 = sphi 0, %s53
      %s57 = sphi 0, %s56
      %s73 = sphi 0, %s57
      %s77 = sphi 0, %s77
      %s79 = sphi 0, %s77
      %s80 = sphi 0, %s79
      %s94 = sphi 0, %s80
      %s98 = sphi 0, %s98
      %s100 = sphi 0, %s98
      %s101 = sphi 0, %s100
      %s115 = sphi 0, %s101
      %s119 = sphi 0, %s119
      %s121 = sphi 0, %s119
      %s122 = sphi 0, %s121
      %s136 = sphi 0, %s122
      %s140 = sphi 0, %s140
      %s142 = sphi 0, %s140
      %s143 = sphi 0, %s142
      %s157 = sphi 0, %s143
      %s161 = sphi 0, %s161
      %s163 = sphi 0, %s161
      %s164 = sphi 0, %s163
      %s178 = sphi 0, %s164
      %s182 = sphi 0, %s182
      %s184 = sphi 0, %s182
      %s185 = sphi 0, %s184
      %s199 = sphi 0, %s185
      %s203 = sphi 0, %s203
      %s205 = sphi 0, %s203
      %s206 = sphi 0, %s205
      %s220 = sphi 0, %s206
      %s224 = sphi 0, %s224
      %s226 = sphi 0, %s224
      %s227 = sphi 0, %s226
      %s241 = sphi 0, %s227
      %s247 = sphi 0, %s249
      %s250 = sphi 0, %s247
      %s251 = sphi 0, %s250
      %s267 = sphi 0, %s251
    $region4: #{connectome_gnn_forward.2} parent=1 // loop_header_branch
      %20 = sbr.rel (%p18) target = $region8
    $region5: #{connectome_gnn_forward.2} parent=1 // loop_body
      %s22 = ssub.s32 %s17, 1
      %s23 = ssub.s32 %s17, 2
      %s24 = sadd.s32 %s17, 1
      %s25 = ssub.s32 %s17, %s24
      %p26 = scmp.eq.s32.totalorder %s25, 0
      %s28 = sadd.s32 %s27, 1
      %s29 = scalar_select %p26, %s27, %s28
      %p32 = pneg %p26
      %p33 = scmp.eq.s32.totalorder %s17, 1
      %p34 = por %p32, %p33
      %p35 = scmp.ne.s32.totalorder %s27, %s30
      %p36 = scmp.eq.s32.totalorder %s17, 0
      %p37 = por %p35, %p36
      %p38 = scmp.ne.s32.totalorder %s27, %s30
      %p39 = scmp.eq.s32.totalorder %s22, 1
      %p40 = por %p38, %p39
      %p41 = scmp.ne.s32.totalorder %s30, %s31
      %p42 = scmp.eq.s32.totalorder %s22, 0
      %p43 = por %p41, %p42
      %p44 = scmp.ne.s32.totalorder %s30, %s31
      %p45 = scmp.eq.s32.totalorder %s23, 1
      %p46 = por %p44, %p45
      %p48 = scmp.ne.s32.totalorder %s31, %s47
      %p49 = scmp.eq.s32.totalorder %s23, 0
      %p50 = por %p48, %p49
      %s51 = ssub.s32 %s17, %s24
      %p52 = scmp.eq.s32.totalorder %s51, 0
      %s54 = sadd.s32 %s53, 1
      %s55 = scalar_select %p52, %s53, %s54
      %p58 = pneg %p52
      %p59 = scmp.eq.s32.totalorder %s17, 1
      %p60 = por %p58, %p59
      %p61 = scmp.ne.s32.totalorder %s53, %s56
      %p62 = scmp.eq.s32.totalorder %s17, 0
      %p63 = por %p61, %p62
      %p64 = scmp.ne.s32.totalorder %s53, %s56
      %p65 = scmp.eq.s32.totalorder %s22, 1
      %p66 = por %p64, %p65
      %p67 = scmp.ne.s32.totalorder %s56, %s57
      %p68 = scmp.eq.s32.totalorder %s22, 0
      %p69 = por %p67, %p68
      %p70 = scmp.ne.s32.totalorder %s56, %s57
      %p71 = scmp.eq.s32.totalorder %s23, 1
      %p72 = por %p70, %p71
      %p74 = scmp.ne.s32.totalorder %s57, %s73
      %p75 = scmp.eq.s32.totalorder %s23, 0
      %p76 = por %p74, %p75
      %s78 = sadd.s32 %s77, 1
      %p81 = scmp.eq.s32.totalorder %s17, 1
      %p82 = scmp.ne.s32.totalorder %s77, %s79
      %p83 = scmp.eq.s32.totalorder %s17, 0
      %p84 = por %p82, %p83
      %p85 = scmp.ne.s32.totalorder %s77, %s79
      %p86 = scmp.eq.s32.totalorder %s22, 1
      %p87 = por %p85, %p86
      %p88 = scmp.ne.s32.totalorder %s79, %s80
      %p89 = scmp.eq.s32.totalorder %s22, 0
      %p90 = por %p88, %p89
      %p91 = scmp.ne.s32.totalorder %s79, %s80
      %p92 = scmp.eq.s32.totalorder %s23, 1
      %p93 = por %p91, %p92
      %p95 = scmp.ne.s32.totalorder %s80, %s94
      %p96 = scmp.eq.s32.totalorder %s23, 0
      %p97 = por %p95, %p96
      %s99 = sadd.s32 %s98, 1
      %p102 = scmp.eq.s32.totalorder %s17, 1
      %p103 = scmp.ne.s32.totalorder %s98, %s100
      %p104 = scmp.eq.s32.totalorder %s17, 0
      %p105 = por %p103, %p104
      %p106 = scmp.ne.s32.totalorder %s98, %s100
      %p107 = scmp.eq.s32.totalorder %s22, 1
      %p108 = por %p106, %p107
      %p109 = scmp.ne.s32.totalorder %s100, %s101
      %p110 = scmp.eq.s32.totalorder %s22, 0
      %p111 = por %p109, %p110
      %p112 = scmp.ne.s32.totalorder %s100, %s101
      %p113 = scmp.eq.s32.totalorder %s23, 1
      %p114 = por %p112, %p113
      %p116 = scmp.ne.s32.totalorder %s101, %s115
      %p117 = scmp.eq.s32.totalorder %s23, 0
      %p118 = por %p116, %p117
      %s120 = sadd.s32 %s119, 1
      %p123 = scmp.eq.s32.totalorder %s17, 1
      %p124 = scmp.ne.s32.totalorder %s119, %s121
      %p125 = scmp.eq.s32.totalorder %s17, 0
      %p126 = por %p124, %p125
      %p127 = scmp.ne.s32.totalorder %s119, %s121
      %p128 = scmp.eq.s32.totalorder %s22, 1
      %p129 = por %p127, %p128
      %p130 = scmp.ne.s32.totalorder %s121, %s122
      %p131 = scmp.eq.s32.totalorder %s22, 0
      %p132 = por %p130, %p131
      %p133 = scmp.ne.s32.totalorder %s121, %s122
      %p134 = scmp.eq.s32.totalorder %s23, 1
      %p135 = por %p133, %p134
      %p137 = scmp.ne.s32.totalorder %s122, %s136
      %p138 = scmp.eq.s32.totalorder %s23, 0
      %p139 = por %p137, %p138
      %s141 = sadd.s32 %s140, 1
      %p144 = scmp.eq.s32.totalorder %s17, 1
      %p145 = scmp.ne.s32.totalorder %s140, %s142
      %p146 = scmp.eq.s32.totalorder %s17, 0
      %p147 = por %p145, %p146
      %p148 = scmp.ne.s32.totalorder %s140, %s142
      %p149 = scmp.eq.s32.totalorder %s22, 1
      %p150 = por %p148, %p149
      %p151 = scmp.ne.s32.totalorder %s142, %s143
      %p152 = scmp.eq.s32.totalorder %s22, 0
      %p153 = por %p151, %p152
      %p154 = scmp.ne.s32.totalorder %s142, %s143
      %p155 = scmp.eq.s32.totalorder %s23, 1
      %p156 = por %p154, %p155
      %p158 = scmp.ne.s32.totalorder %s143, %s157
      %p159 = scmp.eq.s32.totalorder %s23, 0
      %p160 = por %p158, %p159
      %s162 = sadd.s32 %s161, 1
      %p165 = scmp.eq.s32.totalorder %s17, 1
      %p166 = scmp.ne.s32.totalorder %s161, %s163
      %p167 = scmp.eq.s32.totalorder %s17, 0
      %p168 = por %p166, %p167
      %p169 = scmp.ne.s32.totalorder %s161, %s163
      %p170 = scmp.eq.s32.totalorder %s22, 1
      %p171 = por %p169, %p170
      %p172 = scmp.ne.s32.totalorder %s163, %s164
      %p173 = scmp.eq.s32.totalorder %s22, 0
      %p174 = por %p172, %p173
      %p175 = scmp.ne.s32.totalorder %s163, %s164
      %p176 = scmp.eq.s32.totalorder %s23, 1
      %p177 = por %p175, %p176
      %p179 = scmp.ne.s32.totalorder %s164, %s178
      %p180 = scmp.eq.s32.totalorder %s23, 0
      %p181 = por %p179, %p180
      %s183 = sadd.s32 %s182, 1
      %p186 = scmp.eq.s32.totalorder %s17, 1
      %p187 = scmp.ne.s32.totalorder %s182, %s184
      %p188 = scmp.eq.s32.totalorder %s17, 0
      %p189 = por %p187, %p188
      %p190 = scmp.ne.s32.totalorder %s182, %s184
      %p191 = scmp.eq.s32.totalorder %s22, 1
      %p192 = por %p190, %p191
      %p193 = scmp.ne.s32.totalorder %s184, %s185
      %p194 = scmp.eq.s32.totalorder %s22, 0
      %p195 = por %p193, %p194
      %p196 = scmp.ne.s32.totalorder %s184, %s185
      %p197 = scmp.eq.s32.totalorder %s23, 1
      %p198 = por %p196, %p197
      %p200 = scmp.ne.s32.totalorder %s185, %s199
      %p201 = scmp.eq.s32.totalorder %s23, 0
      %p202 = por %p200, %p201
      %s204 = sadd.s32 %s203, 1
      %p207 = scmp.eq.s32.totalorder %s17, 1
      %p208 = scmp.ne.s32.totalorder %s203, %s205
      %p209 = scmp.eq.s32.totalorder %s17, 0
      %p210 = por %p208, %p209
      %p211 = scmp.ne.s32.totalorder %s203, %s205
      %p212 = scmp.eq.s32.totalorder %s22, 1
      %p213 = por %p211, %p212
      %p214 = scmp.ne.s32.totalorder %s205, %s206
      %p215 = scmp.eq.s32.totalorder %s22, 0
      %p216 = por %p214, %p215
      %p217 = scmp.ne.s32.totalorder %s205, %s206
      %p218 = scmp.eq.s32.totalorder %s23, 1
      %p219 = por %p217, %p218
      %p221 = scmp.ne.s32.totalorder %s206, %s220
      %p222 = scmp.eq.s32.totalorder %s23, 0
      %p223 = por %p221, %p222
      %s225 = sadd.s32 %s224, 1
      %p228 = scmp.eq.s32.totalorder %s17, 1
      %p229 = scmp.ne.s32.totalorder %s224, %s226
      %p230 = scmp.eq.s32.totalorder %s17, 0
      %p231 = por %p229, %p230
      %p232 = scmp.ne.s32.totalorder %s224, %s226
      %p233 = scmp.eq.s32.totalorder %s22, 1
      %p234 = por %p232, %p233
      %p235 = scmp.ne.s32.totalorder %s226, %s227
      %p236 = scmp.eq.s32.totalorder %s22, 0
      %p237 = por %p235, %p236
      %p238 = scmp.ne.s32.totalorder %s226, %s227
      %p239 = scmp.eq.s32.totalorder %s23, 1
      %p240 = por %p238, %p239
      %p242 = scmp.ne.s32.totalorder %s227, %s241
      %p243 = scmp.eq.s32.totalorder %s23, 0
      %p244 = por %p242, %p243
      %s245 = ssub.s32 %s17, %s24
      %p246 = scmp.eq.s32.totalorder %s245, 0
      %s248 = sadd.s32 %s247, 1
      %s249 = scalar_select %p246, %s247, %s248
      %p252 = pneg %p246
      %p253 = scmp.eq.s32.totalorder %s17, 1
      %p254 = por %p252, %p253
      %p255 = scmp.ne.s32.totalorder %s247, %s250
      %p256 = scmp.eq.s32.totalorder %s17, 0
      %p257 = por %p255, %p256
      %p258 = scmp.ne.s32.totalorder %s247, %s250
      %p259 = scmp.eq.s32.totalorder %s22, 1
      %p260 = por %p258, %p259
      %p261 = scmp.ne.s32.totalorder %s250, %s251
      %p262 = scmp.eq.s32.totalorder %s22, 0
      %p263 = por %p261, %p262
      %p264 = scmp.ne.s32.totalorder %s250, %s251
      %p265 = scmp.eq.s32.totalorder %s23, 1
      %p266 = por %p264, %p265
      %p268 = scmp.ne.s32.totalorder %s251, %s267
      %p269 = scmp.eq.s32.totalorder %s23, 0
      %p270 = por %p268, %p269
      %p271 = scmp.le.s32.totalorder 1, %s17
      %p272 = scmp.lt.s32.totalorder %s17, 3
      %p273 = pnand %p271, %p272
      %p274 = pneg %p273
      // Predicated region
      $region9: #{connectome_gnn_forward.2} parent=5 // pred_check
        _
      $region10: #{connectome_gnn_forward.2} parent=5 // pred_check_branch
        %276 = sbr.rel (%p273) target = $region12
      $region11: #{connectome_gnn_forward.2} parent=5 // pred_region
        %s277 = ssub.s32 %s17, 1
        // Predicated region
        $region13: #{connectome_gnn_forward.2} parent=11 // pred_check
          %p278 = pneg %p90
        $region14: #{connectome_gnn_forward.2} parent=11 // pred_check_branch
          %280 = sbr.rel (%p278) target = $region16
        $region15: #{connectome_gnn_forward.2} parent=11 // pred_region
          _
        $region16: #{connectome_gnn_forward.2} parent=11 // pred_fallthru
          _
        // Predicated region
        $region17: #{connectome_gnn_forward.2} parent=11 // pred_check
          %p281 = pneg %p111
        $region18: #{connectome_gnn_forward.2} parent=11 // pred_check_branch
          %283 = sbr.rel (%p281) target = $region20
        $region19: #{connectome_gnn_forward.2} parent=11 // pred_region
          _
        $region20: #{connectome_gnn_forward.2} parent=11 // pred_fallthru
          _
        // Predicated region
        $region21: #{connectome_gnn_forward.2} parent=11 // pred_check
          %p284 = pneg %p132
        $region22: #{connectome_gnn_forward.2} parent=11 // pred_check_branch
          %286 = sbr.rel (%p284) target = $region24
        $region23: #{connectome_gnn_forward.2} parent=11 // pred_region
          _
        $region24: #{connectome_gnn_forward.2} parent=11 // pred_fallthru
          _
        // Predicated region
        $region25: #{connectome_gnn_forward.2} parent=11 // pred_check
          %p287 = pneg %p153
        $region26: #{connectome_gnn_forward.2} parent=11 // pred_check_branch
          %289 = sbr.rel (%p287) target = $region28
        $region27: #{connectome_gnn_forward.2} parent=11 // pred_region
          _
        $region28: #{connectome_gnn_forward.2} parent=11 // pred_fallthru
          _
        // Predicated region
        $region29: #{connectome_gnn_forward.2} parent=11 // pred_check
          %p290 = pneg %p174
        $region30: #{connectome_gnn_forward.2} parent=11 // pred_check_branch
          %292 = sbr.rel (%p290) target = $region32
        $region31: #{connectome_gnn_forward.2} parent=11 // pred_region
          _
        $region32: #{connectome_gnn_forward.2} parent=11 // pred_fallthru
          _
        // Predicated region
        $region33: #{connectome_gnn_forward.2} parent=11 // pred_check
          %p293 = pneg %p195
        $region34: #{connectome_gnn_forward.2} parent=11 // pred_check_branch
          %295 = sbr.rel (%p293) target = $region36
        $region35: #{connectome_gnn_forward.2} parent=11 // pred_region
          _
        $region36: #{connectome_gnn_forward.2} parent=11 // pred_fallthru
          _
        // Predicated region
        $region37: #{connectome_gnn_forward.2} parent=11 // pred_check
          %p296 = pneg %p216
        $region38: #{connectome_gnn_forward.2} parent=11 // pred_check_branch
          %298 = sbr.rel (%p296) target = $region40
        $region39: #{connectome_gnn_forward.2} parent=11 // pred_region
          _
        $region40: #{connectome_gnn_forward.2} parent=11 // pred_fallthru
          _
        // Predicated region
        $region41: #{connectome_gnn_forward.2} parent=11 // pred_check
          %p299 = pneg %p237
        $region42: #{connectome_gnn_forward.2} parent=11 // pred_check_branch
          %301 = sbr.rel (%p299) target = $region44
        $region43: #{connectome_gnn_forward.2} parent=11 // pred_region
          %303 = vsyncadd [#allocation3], 0
          %s305 = sshll.u32 %s9, 4
          %s306 = int_to_ptr.vmem [resolvable:$true] %s305
          %308 = dma.vmem_to_smem %s306, 16, [#allocation2], [#allocation3]
        $region44: #{connectome_gnn_forward.2} parent=11 // pred_fallthru
          _
      $region12: #{connectome_gnn_forward.2} parent=5 // pred_fallthru
        _
      %p309 = scmp.lt.s32.totalorder %s17, 2
      // Predicated region
      $region45: #{connectome_gnn_forward.2} parent=5 // pred_check
        %p310 = pneg %p309
      $region46: #{connectome_gnn_forward.2} parent=5 // pred_check_branch
        %312 = sbr.rel (%p310) target = $region48
      $region47: #{connectome_gnn_forward.2} parent=5 // pred_region
        // Predicated region
        $region49: #{connectome_gnn_forward.2} parent=47 // pred_check
          %p313 = pneg %p37
        $region50: #{connectome_gnn_forward.2} parent=47 // pred_check_branch
          %315 = sbr.rel (%p313) target = $region52
        $region51: #{connectome_gnn_forward.2} parent=47 // pred_region
          %s316 = smul.u32 8, %s17
          %p317 = scmp.lt.s32.totalorder %s316, 15
          %s318 = scalar_select %p317, %s316, 15
          %s319 = smul.addr %s318, 2
          %s320 = smul.addr %s319, 4
          %s321 = scalar_lea.vmem %s0, %s320
          %s322 = smul.u32 8, %s17
        $region52: #{connectome_gnn_forward.2} parent=47 // pred_fallthru
          _
        // Predicated region
        $region53: #{connectome_gnn_forward.2} parent=47 // pred_check
          %p323 = pneg %p63
        $region54: #{connectome_gnn_forward.2} parent=47 // pred_check_branch
          %325 = sbr.rel (%p323) target = $region56
        $region55: #{connectome_gnn_forward.2} parent=47 // pred_region
          %s326 = smul.u32 8, %s17
          %p327 = scmp.lt.s32.totalorder %s326, 15
          %s328 = scalar_select %p327, %s326, 15
          %s329 = smul.addr %s328, 2
          %s330 = smul.addr %s329, 4
          %s331 = scalar_lea.vmem %s1, %s330
          %s332 = smul.u32 8, %s17
        $region56: #{connectome_gnn_forward.2} parent=47 // pred_fallthru
          _
      $region48: #{connectome_gnn_forward.2} parent=5 // pred_fallthru
        _
      %p333 = scmp.le.s32.totalorder 1, %s17
      %p334 = scmp.lt.s32.totalorder %s17, 3
      %p335 = pnand %p333, %p334
      %p336 = pneg %p335
      // Predicated region
      $region57: #{connectome_gnn_forward.2} parent=5 // pred_check
        _
      $region58: #{connectome_gnn_forward.2} parent=5 // pred_check_branch
        %338 = sbr.rel (%p335) target = $region60
      $region59: #{connectome_gnn_forward.2} parent=5 // pred_region
        %s339 = ssub.s32 %s17, 1
        // Predicated region
        $region61: #{connectome_gnn_forward.2} parent=59 // pred_check
          %p340 = pneg %p237
        $region62: #{connectome_gnn_forward.2} parent=59 // pred_check_branch
          %342 = sbr.rel (%p340) target = $region64
        $region63: #{connectome_gnn_forward.2} parent=59 // pred_region
          %344 = dma.done [#allocation3], 16
        $region64: #{connectome_gnn_forward.2} parent=59 // pred_fallthru
          _
        %345 = sfence
        %s346 = smul.u32 8, %s22
        %p347 = scmp.lt.s32.totalorder %s346, 15
        %s348 = scalar_select %p347, %s346, 15
        %s349 = smul.addr %s348, 2
        %s350 = smul.addr %s349, 4
        %s351 = scalar_lea.vmem %s0, %s350
        %p352 = pneg %p43
        %p353 = pneg %p40
        %s354 = smul.u32 8, %s22
        %p355 = scmp.lt.s32.totalorder %s354, 15
        %s356 = scalar_select %p355, %s354, 15
        %s357 = smul.addr %s356, 2
        %s358 = smul.addr %s357, 4
        %s359 = scalar_lea.vmem %s1, %s358
        %p360 = pneg %p69
        %p361 = pneg %p66
        %p362 = pneg %p90
        %p363 = pneg %p87
        %p364 = pneg %p111
        %p365 = pneg %p108
        %p366 = pneg %p132
        %p367 = pneg %p129
        %p368 = pneg %p153
        %p369 = pneg %p150
        %p370 = pneg %p174
        %p371 = pneg %p171
        %p372 = pneg %p195
        %p373 = pneg %p192
        %p374 = pneg %p216
        %p375 = pneg %p213
        %p376 = pneg %p237
        %p377 = pneg %p234
        %p378 = pneg %p263
        %p379 = pneg %p260
        %s380 = smul.u32 8, %s22
        %p381 = scmp.lt.s32.totalorder %s380, 15
        %s382 = scalar_select %p381, %s380, 15
        %s383 = smul.addr %s382, 2
        %s384 = smul.addr %s383, 8
        %s385 = scalar_lea.vmem %s10, %s384
        %s386 = smul.u32 8, %s22
        %p387 = scmp.lt.s32.totalorder %s386, 15
        %s388 = scalar_select %p387, %s386, 15
        %s389 = smul.addr %s388, 2
        %s390 = smul.addr %s389, 4
        %s391 = scalar_lea.vmem %s0, %s390
        %s392 = smul.u32 8, %s22
        %s393 = smul.u32 8, %s22
        %p394 = scmp.lt.s32.totalorder %s393, 15
        %s395 = scalar_select %p394, %s393, 15
        %s396 = smul.addr %s395, 2
        %s397 = smul.addr %s396, 4
        %s398 = scalar_lea.vmem %s1, %s397
        %s399 = smul.u32 8, %s22
        %s400 = smul.u32 8, %s22
        %p401 = scmp.lt.s32.totalorder %s400, 15
        %s402 = scalar_select %p401, %s400, 15
        %s403 = smul.addr %s402, 2
        %s404 = smul.addr %s403, 8
        %s405 = scalar_lea.vmem %s10, %s404
        %s406 = smul.u32 8, %s22
        %v408 = vld [vmem:[%s398] sm:$0xf]
        %v409 = vld [vmem:[%s398 + $0x4] sm:$0xf]
        %v410 = vld [vmem:[%s398 + $0x8] sm:$0xf]
        %v411 = vld [vmem:[%s398 + $0xc] sm:$0xf]
        %v412 = vld [vmem:[%s398 + $0x10] sm:$0xf]
        %v413 = vld [vmem:[%s398 + $0x14] sm:$0xf]
        %v414 = vld [vmem:[%s398 + $0x18] sm:$0xf]
        %v415 = vld [vmem:[%s398 + $0x1c] sm:$0xf]
        %v416 = vld [vmem:[%s398 + $0x20] sm:$0xf]
        %v417 = vld [vmem:[%s398 + $0x24] sm:$0xf]
        %v418 = vld [vmem:[%s398 + $0x28] sm:$0xf]
        %v419 = vld [vmem:[%s398 + $0x2c] sm:$0xf]
        %v420 = vld [vmem:[%s398 + $0x30] sm:$0xf]
        %v421 = vld [vmem:[%s398 + $0x34] sm:$0xf]
        %v422 = vld [vmem:[%s398 + $0x38] sm:$0xf]
        %v423 = vld [vmem:[%s398 + $0x3c] sm:$0xf]
        %v424 = vld [vmem:[%s391] sm:$0xf]
        %v425 = vld [vmem:[%s391 + $0x4] sm:$0xf]
        %v426 = vld [vmem:[%s391 + $0x8] sm:$0xf]
        %v427 = vld [vmem:[%s391 + $0xc] sm:$0xf]
        %v428 = vld [vmem:[%s391 + $0x10] sm:$0xf]
        %v429 = vld [vmem:[%s391 + $0x14] sm:$0xf]
        %v430 = vld [vmem:[%s391 + $0x18] sm:$0xf]
        %v431 = vld [vmem:[%s391 + $0x1c] sm:$0xf]
        %v432 = vld [vmem:[%s391 + $0x20] sm:$0xf]
        %v433 = vld [vmem:[%s391 + $0x24] sm:$0xf]
        %v434 = vld [vmem:[%s391 + $0x28] sm:$0xf]
        %v435 = vld [vmem:[%s391 + $0x2c] sm:$0xf]
        %v436 = vld [vmem:[%s391 + $0x30] sm:$0xf]
        %v437 = vld [vmem:[%s391 + $0x34] sm:$0xf]
        %v438 = vld [vmem:[%s391 + $0x38] sm:$0xf]
        %v439 = vld [vmem:[%s391 + $0x3c] sm:$0xf]
        %v440 = vld [vmem:[%s2] sm:$0xf]
        %v441 = vld [vmem:[%s2 + $0x4] sm:$0xf]
        %v442 = vld [vmem:[%s3] sm:$0x1]
        %s443 = sld [smem:[#allocation2]]
        %v446 = vunpack.c.l.b16 %v408
        %v447 = vunpack.c.l.b16 %v409
        %v448 = vpack.c.b16 %v447, %v446
        %v451 = vunpack.c.l.b16 %v424
        %v452 = vunpack.c.l.b16 %v425
        %v453 = vpack.c.b16 %v452, %v451
        %vm455 = vcmask 130048
        %v457 = vsel %vm455, %v448, 0
        %459 = vmatpush.bf16.msra.mxu0 0
        %460 = vmatpush.bf16.msra.mxu0 0
        %461 = vmatpush.bf16.msra.mxu0 0
        %462 = vmatpush.bf16.msra.mxu0 0
        %463 = vmatpush.bf16.msra.mxu0 0
        %464 = vmatpush.bf16.msra.mxu0 0
        %465 = vmatpush.bf16.msra.mxu0 0
        %466 = vmatpush.bf16.msra.mxu0 %v453
        %467 = vmatmul.bf16.gmra.mxu0 %v457
        %v468 = vpop.f32.mrf.mxu0
        %v469 = vadd.f32 0.0, %v468
        %v470 = vpop.f32.mrf.mxu0
        %v471 = vadd.f32 0.0, %v470
        %472 = vdwg.mxu0
        %v475 = vunpack.c.l.b16 %v410
        %v476 = vunpack.c.l.b16 %v411
        %v477 = vpack.c.b16 %v476, %v475
        %v480 = vunpack.c.l.b16 %v426
        %v481 = vunpack.c.l.b16 %v427
        %v482 = vpack.c.b16 %v481, %v480
        %v485 = vsel %vm455, %v477, 0
        %487 = vmatpush.bf16.msra.mxu0 0
        %488 = vmatpush.bf16.msra.mxu0 0
        %489 = vmatpush.bf16.msra.mxu0 0
        %490 = vmatpush.bf16.msra.mxu0 0
        %491 = vmatpush.bf16.msra.mxu0 0
        %492 = vmatpush.bf16.msra.mxu0 0
        %493 = vmatpush.bf16.msra.mxu0 0
        %494 = vmatpush.bf16.msra.mxu0 %v482
        %495 = vmatmul.bf16.gmra.mxu0 %v485
        %v496 = vpop.f32.mrf.mxu0
        %v497 = vadd.f32 0.0, %v496
        %v498 = vpop.f32.mrf.mxu0
        %v499 = vadd.f32 0.0, %v498
        %500 = vdwg.mxu0
        %v503 = vunpack.c.l.b16 %v412
        %v504 = vunpack.c.l.b16 %v413
        %v505 = vpack.c.b16 %v504, %v503
        %v508 = vunpack.c.l.b16 %v428
        %v509 = vunpack.c.l.b16 %v429
        %v510 = vpack.c.b16 %v509, %v508
        %v513 = vsel %vm455, %v505, 0
        %515 = vmatpush.bf16.msra.mxu0 0
        %516 = vmatpush.bf16.msra.mxu0 0
        %517 = vmatpush.bf16.msra.mxu0 0
        %518 = vmatpush.bf16.msra.mxu0 0
        %519 = vmatpush.bf16.msra.mxu0 0
        %520 = vmatpush.bf16.msra.mxu0 0
        %521 = vmatpush.bf16.msra.mxu0 0
        %522 = vmatpush.bf16.msra.mxu0 %v510
        %523 = vmatmul.bf16.gmra.mxu0 %v513
        %v524 = vpop.f32.mrf.mxu0
        %v525 = vadd.f32 0.0, %v524
        %v526 = vpop.f32.mrf.mxu0
        %v527 = vadd.f32 0.0, %v526
        %528 = vdwg.mxu0
        %v531 = vunpack.c.l.b16 %v414
        %v532 = vunpack.c.l.b16 %v415
        %v533 = vpack.c.b16 %v532, %v531
        %v536 = vunpack.c.l.b16 %v430
        %v537 = vunpack.c.l.b16 %v431
        %v538 = vpack.c.b16 %v537, %v536
        %v541 = vsel %vm455, %v533, 0
        %543 = vmatpush.bf16.msra.mxu0 0
        %544 = vmatpush.bf16.msra.mxu0 0
        %545 = vmatpush.bf16.msra.mxu0 0
        %546 = vmatpush.bf16.msra.mxu0 0
        %547 = vmatpush.bf16.msra.mxu0 0
        %548 = vmatpush.bf16.msra.mxu0 0
        %549 = vmatpush.bf16.msra.mxu0 0
        %550 = vmatpush.bf16.msra.mxu0 %v538
        %551 = vmatmul.bf16.gmra.mxu0 %v541
        %v552 = vpop.f32.mrf.mxu0
        %v553 = vadd.f32 0.0, %v552
        %v554 = vpop.f32.mrf.mxu0
        %v555 = vadd.f32 0.0, %v554
        %556 = vdwg.mxu0
        %v559 = vunpack.c.l.b16 %v416
        %v560 = vunpack.c.l.b16 %v417
        %v561 = vpack.c.b16 %v560, %v559
        %v564 = vunpack.c.l.b16 %v432
        %v565 = vunpack.c.l.b16 %v433
        %v566 = vpack.c.b16 %v565, %v564
        %v569 = vsel %vm455, %v561, 0
        %571 = vmatpush.bf16.msra.mxu0 0
        %572 = vmatpush.bf16.msra.mxu0 0
        %573 = vmatpush.bf16.msra.mxu0 0
        %574 = vmatpush.bf16.msra.mxu0 0
        %575 = vmatpush.bf16.msra.mxu0 0
        %576 = vmatpush.bf16.msra.mxu0 0
        %577 = vmatpush.bf16.msra.mxu0 0
        %578 = vmatpush.bf16.msra.mxu0 %v566
        %579 = vmatmul.bf16.gmra.mxu0 %v569
        %v580 = vpop.f32.mrf.mxu0
        %v581 = vadd.f32 0.0, %v580
        %v582 = vpop.f32.mrf.mxu0
        %v583 = vadd.f32 0.0, %v582
        %584 = vdwg.mxu0
        %v587 = vunpack.c.l.b16 %v418
        %v588 = vunpack.c.l.b16 %v419
        %v589 = vpack.c.b16 %v588, %v587
        %v592 = vunpack.c.l.b16 %v434
        %v593 = vunpack.c.l.b16 %v435
        %v594 = vpack.c.b16 %v593, %v592
        %v597 = vsel %vm455, %v589, 0
        %599 = vmatpush.bf16.msra.mxu0 0
        %600 = vmatpush.bf16.msra.mxu0 0
        %601 = vmatpush.bf16.msra.mxu0 0
        %602 = vmatpush.bf16.msra.mxu0 0
        %603 = vmatpush.bf16.msra.mxu0 0
        %604 = vmatpush.bf16.msra.mxu0 0
        %605 = vmatpush.bf16.msra.mxu0 0
        %606 = vmatpush.bf16.msra.mxu0 %v594
        %607 = vmatmul.bf16.gmra.mxu0 %v597
        %v608 = vpop.f32.mrf.mxu0
        %v609 = vadd.f32 0.0, %v608
        %v610 = vpop.f32.mrf.mxu0
        %v611 = vadd.f32 0.0, %v610
        %612 = vdwg.mxu0
        %v615 = vunpack.c.l.b16 %v420
        %v616 = vunpack.c.l.b16 %v421
        %v617 = vpack.c.b16 %v616, %v615
        %v620 = vunpack.c.l.b16 %v436
        %v621 = vunpack.c.l.b16 %v437
        %v622 = vpack.c.b16 %v621, %v620
        %v625 = vsel %vm455, %v617, 0
        %627 = vmatpush.bf16.msra.mxu0 0
        %628 = vmatpush.bf16.msra.mxu0 0
        %629 = vmatpush.bf16.msra.mxu0 0
        %630 = vmatpush.bf16.msra.mxu0 0
        %631 = vmatpush.bf16.msra.mxu0 0
        %632 = vmatpush.bf16.msra.mxu0 0
        %633 = vmatpush.bf16.msra.mxu0 0
        %634 = vmatpush.bf16.msra.mxu0 %v622
        %635 = vmatmul.bf16.gmra.mxu0 %v625
        %v636 = vpop.f32.mrf.mxu0
        %v637 = vadd.f32 0.0, %v636
        %v638 = vpop.f32.mrf.mxu0
        %v639 = vadd.f32 0.0, %v638
        %640 = vdwg.mxu0
        %v643 = vunpack.c.l.b16 %v422
        %v644 = vunpack.c.l.b16 %v423
        %v645 = vpack.c.b16 %v644, %v643
        %v648 = vunpack.c.l.b16 %v438
        %v649 = vunpack.c.l.b16 %v439
        %v650 = vpack.c.b16 %v649, %v648
        %v653 = vsel %vm455, %v645, 0
        %655 = vmatpush.bf16.msra.mxu0 0
        %656 = vmatpush.bf16.msra.mxu0 0
        %657 = vmatpush.bf16.msra.mxu0 0
        %658 = vmatpush.bf16.msra.mxu0 0
        %659 = vmatpush.bf16.msra.mxu0 0
        %660 = vmatpush.bf16.msra.mxu0 0
        %661 = vmatpush.bf16.msra.mxu0 0
        %662 = vmatpush.bf16.msra.mxu0 %v650
        %663 = vmatmul.bf16.gmra.mxu0 %v653
        %v664 = vpop.f32.mrf.mxu0
        %v665 = vadd.f32 0.0, %v664
        %v666 = vpop.f32.mrf.mxu0
        %v667 = vadd.f32 0.0, %v666
        %668 = vdwg.mxu0
        %v669 = vpack.c.bf16 %v469, %v469
        %v670 = vpack.c.bf16 %v471, %v471
        %v671 = vpack.c.bf16 %v497, %v497
        %v672 = vpack.c.bf16 %v499, %v499
        %v673 = vpack.c.bf16 %v525, %v525
        %v674 = vpack.c.bf16 %v527, %v527
        %v675 = vpack.c.bf16 %v553, %v553
        %v676 = vpack.c.bf16 %v555, %v555
        %v677 = vpack.c.bf16 %v581, %v581
        %v678 = vpack.c.bf16 %v583, %v583
        %v679 = vpack.c.bf16 %v609, %v609
        %v680 = vpack.c.bf16 %v611, %v611
        %v681 = vpack.c.bf16 %v637, %v637
        %v682 = vpack.c.bf16 %v639, %v639
        %v683 = vpack.c.bf16 %v665, %v665
        %v684 = vpack.c.bf16 %v667, %v667
        %v701 = vunpack.c.l.b16 %v669
        %v702 = vunpack.c.l.b16 %v670
        %v703 = vunpack.c.l.b16 %v671
        %v704 = vunpack.c.l.b16 %v672
        %v705 = vunpack.c.l.b16 %v673
        %v706 = vunpack.c.l.b16 %v674
        %v707 = vunpack.c.l.b16 %v675
        %v708 = vunpack.c.l.b16 %v676
        %v709 = vunpack.c.l.b16 %v677
        %v710 = vunpack.c.l.b16 %v678
        %v711 = vunpack.c.l.b16 %v679
        %v712 = vunpack.c.l.b16 %v680
        %v713 = vunpack.c.l.b16 %v681
        %v714 = vunpack.c.l.b16 %v682
        %v715 = vunpack.c.l.b16 %v683
        %v716 = vunpack.c.l.b16 %v684
        %v717 = vpack.c.b16 %v702, %v701
        %v718 = vpack.c.b16 %v704, %v703
        %v719 = vpack.c.b16 %v706, %v705
        %v720 = vpack.c.b16 %v708, %v707
        %v721 = vpack.c.b16 %v710, %v709
        %v722 = vpack.c.b16 %v712, %v711
        %v723 = vpack.c.b16 %v714, %v713
        %v724 = vpack.c.b16 %v716, %v715
        %725 = vrot.lane.b32.xlu0 %v453, 8
        %v726 = vpop.permute.xlu0 %725
        %727 = vrot.lane.b32.xlu0 %v482, 8
        %v728 = vpop.permute.xlu0 %727
        %729 = vrot.lane.b32.xlu0 %v510, 8
        %v730 = vpop.permute.xlu0 %729
        %731 = vrot.lane.b32.xlu0 %v538, 8
        %v732 = vpop.permute.xlu0 %731
        %733 = vrot.lane.b32.xlu0 %v566, 8
        %v734 = vpop.permute.xlu0 %733
        %735 = vrot.lane.b32.xlu0 %v594, 8
        %v736 = vpop.permute.xlu0 %735
        %737 = vrot.lane.b32.xlu0 %v622, 8
        %v738 = vpop.permute.xlu0 %737
        %739 = vrot.lane.b32.xlu0 %v650, 8
        %v740 = vpop.permute.xlu0 %739
        %vm741 = vcmask 64512
        %v744 = vsel %vm741, %v717, %v726
        %v747 = vsel %vm741, %v718, %v728
        %v750 = vsel %vm741, %v719, %v730
        %v753 = vsel %vm741, %v720, %v732
        %v756 = vsel %vm741, %v721, %v734
        %v759 = vsel %vm741, %v722, %v736
        %v762 = vsel %vm741, %v723, %v738
        %v765 = vsel %vm741, %v724, %v740
        %v767 = vperm.slane %v442, 0
        %v771 = vunpack.c.l.b16 %v440
        %v772 = vunpack.c.l.b16 %v441
        %v773 = vpack.c.b16 %v772, %v771
        %v775 = vsel %vm455, %v744, 0
        %v777 = vsel %vm455, %v747, 0
        %v779 = vsel %vm455, %v750, 0
        %v781 = vsel %vm455, %v753, 0
        %v783 = vsel %vm455, %v756, 0
        %v785 = vsel %vm455, %v759, 0
        %v787 = vsel %vm455, %v762, 0
        %v789 = vsel %vm455, %v765, 0
        %791 = vmatpush.bf16.msra.mxu0 0
        %792 = vmatpush.bf16.msra.mxu0 0
        %793 = vmatpush.bf16.msra.mxu0 0
        %794 = vmatpush.bf16.msra.mxu0 0
        %795 = vmatpush.bf16.msra.mxu0 0
        %796 = vmatpush.bf16.msra.mxu0 0
        %797 = vmatpush.bf16.msra.mxu0 0
        %798 = vmatpush.bf16.msra.mxu0 %v773
        %799 = vmatmul.bf16.gmra.mxu0 %v775
        %v800 = vpop.f32.mrf.mxu0
        %v801 = vadd.f32 %v767, %v800
        %v802 = vpop.f32.mrf.mxu0
        %v803 = vadd.f32 %v767, %v802
        %804 = vmatmul.bf16.gmra.mxu0 %v777
        %v805 = vpop.f32.mrf.mxu0
        %v806 = vadd.f32 %v767, %v805
        %v807 = vpop.f32.mrf.mxu0
        %v808 = vadd.f32 %v767, %v807
        %809 = vmatmul.bf16.gmra.mxu0 %v779
        %v810 = vpop.f32.mrf.mxu0
        %v811 = vadd.f32 %v767, %v810
        %v812 = vpop.f32.mrf.mxu0
        %v813 = vadd.f32 %v767, %v812
        %814 = vmatmul.bf16.gmra.mxu0 %v781
        %v815 = vpop.f32.mrf.mxu0
        %v816 = vadd.f32 %v767, %v815
        %v817 = vpop.f32.mrf.mxu0
        %v818 = vadd.f32 %v767, %v817
        %819 = vmatmul.bf16.gmra.mxu0 %v783
        %v820 = vpop.f32.mrf.mxu0
        %v821 = vadd.f32 %v767, %v820
        %v822 = vpop.f32.mrf.mxu0
        %v823 = vadd.f32 %v767, %v822
        %824 = vmatmul.bf16.gmra.mxu0 %v785
        %v825 = vpop.f32.mrf.mxu0
        %v826 = vadd.f32 %v767, %v825
        %v827 = vpop.f32.mrf.mxu0
        %v828 = vadd.f32 %v767, %v827
        %829 = vmatmul.bf16.gmra.mxu0 %v787
        %v830 = vpop.f32.mrf.mxu0
        %v831 = vadd.f32 %v767, %v830
        %v832 = vpop.f32.mrf.mxu0
        %v833 = vadd.f32 %v767, %v832
        %834 = vmatmul.bf16.gmra.mxu0 %v789
        %v835 = vpop.f32.mrf.mxu0
        %v836 = vadd.f32 %v767, %v835
        %v837 = vpop.f32.mrf.mxu0
        %v838 = vadd.f32 %v767, %v837
        %839 = vdwg.mxu0
        %vm840 = vcmp.ge.f32.partialorder %v801, 0.0
        %vm841 = vcmp.ge.f32.partialorder %v803, 0.0
        %vm842 = vcmp.ge.f32.partialorder %v806, 0.0
        %vm843 = vcmp.ge.f32.partialorder %v808, 0.0
        %vm844 = vcmp.ge.f32.partialorder %v811, 0.0
        %vm845 = vcmp.ge.f32.partialorder %v813, 0.0
        %vm846 = vcmp.ge.f32.partialorder %v816, 0.0
        %vm847 = vcmp.ge.f32.partialorder %v818, 0.0
        %vm848 = vcmp.ge.f32.partialorder %v821, 0.0
        %vm849 = vcmp.ge.f32.partialorder %v823, 0.0
        %vm850 = vcmp.ge.f32.partialorder %v826, 0.0
        %vm851 = vcmp.ge.f32.partialorder %v828, 0.0
        %vm852 = vcmp.ge.f32.partialorder %v831, 0.0
        %vm853 = vcmp.ge.f32.partialorder %v833, 0.0
        %vm854 = vcmp.ge.f32.partialorder %v836, 0.0
        %vm855 = vcmp.ge.f32.partialorder %v838, 0.0
        %v856 = vstv %s443
        %v857 = vmul.f32 %v856, %v801
        %v858 = vmul.f32 %v856, %v803
        %v859 = vmul.f32 %v856, %v806
        %v860 = vmul.f32 %v856, %v808
        %v861 = vmul.f32 %v856, %v811
        %v862 = vmul.f32 %v856, %v813
        %v863 = vmul.f32 %v856, %v816
        %v864 = vmul.f32 %v856, %v818
        %v865 = vmul.f32 %v856, %v821
        %v866 = vmul.f32 %v856, %v823
        %v867 = vmul.f32 %v856, %v826
        %v868 = vmul.f32 %v856, %v828
        %v869 = vmul.f32 %v856, %v831
        %v870 = vmul.f32 %v856, %v833
        %v871 = vmul.f32 %v856, %v836
        %v872 = vmul.f32 %v856, %v838
        %v873 = vsel %vm840, %v801, %v857
        %v874 = vsel %vm841, %v803, %v858
        %v875 = vsel %vm842, %v806, %v859
        %v876 = vsel %vm843, %v808, %v860
        %v877 = vsel %vm844, %v811, %v861
        %v878 = vsel %vm845, %v813, %v862
        %v879 = vsel %vm846, %v816, %v863
        %v880 = vsel %vm847, %v818, %v864
        %v881 = vsel %vm848, %v821, %v865
        %v882 = vsel %vm849, %v823, %v866
        %v883 = vsel %vm850, %v826, %v867
        %v884 = vsel %vm851, %v828, %v868
        %v885 = vsel %vm852, %v831, %v869
        %v886 = vsel %vm853, %v833, %v870
        %v887 = vsel %vm854, %v836, %v871
        %v888 = vsel %vm855, %v838, %v872
        %v889 = vpack.c.bf16 %v873, %v873
        %v890 = vpack.c.bf16 %v874, %v874
        %v891 = vpack.c.bf16 %v875, %v875
        %v892 = vpack.c.bf16 %v876, %v876
        %v893 = vpack.c.bf16 %v877, %v877
        %v894 = vpack.c.bf16 %v878, %v878
        %v895 = vpack.c.bf16 %v879, %v879
        %v896 = vpack.c.bf16 %v880, %v880
        %v897 = vpack.c.bf16 %v881, %v881
        %v898 = vpack.c.bf16 %v882, %v882
        %v899 = vpack.c.bf16 %v883, %v883
        %v900 = vpack.c.bf16 %v884, %v884
        %v901 = vpack.c.bf16 %v885, %v885
        %v902 = vpack.c.bf16 %v886, %v886
        %v903 = vpack.c.bf16 %v887, %v887
        %v904 = vpack.c.bf16 %v888, %v888
        %v905 = vld [vmem:[%s4] sm:$0xf]
        %v906 = vld [vmem:[%s4 + $0x4] sm:$0xf]
        %v907 = vld [vmem:[%s4 + $0x8] sm:$0xf]
        %v908 = vld [vmem:[%s4 + $0xc] sm:$0xf]
        %v909 = vld [vmem:[%s5] sm:$0x1]
        %s910 = sld [smem:[#allocation2 + $0x1]]
        %v913 = vunpack.c.l.b16 %v889
        %v914 = vunpack.c.l.b16 %v890
        %v915 = vpack.c.b16 %v914, %v913
        %917 = vmatpush.bf16.msra.mxu0 0
        %918 = vmatpush.bf16.msra.mxu0 0
        %919 = vmatpush.bf16.msra.mxu0 0
        %920 = vmatpush.bf16.msra.mxu0 0
        %921 = vmatpush.bf16.msra.mxu0 0
        %922 = vmatpush.bf16.msra.mxu0 0
        %923 = vmatpush.bf16.msra.mxu0 0
        %924 = vmatpush.bf16.msra.mxu0 %v915
        %925 = vmatmul.bf16.gmra.mxu0 %v457
        %v926 = vpop.f32.mrf.mxu0
        %v927 = vadd.f32 0.0, %v926
        %v928 = vpop.f32.mrf.mxu0
        %v929 = vadd.f32 0.0, %v928
        %930 = vdwg.mxu0
        %v933 = vunpack.c.l.b16 %v891
        %v934 = vunpack.c.l.b16 %v892
        %v935 = vpack.c.b16 %v934, %v933
        %937 = vmatpush.bf16.msra.mxu0 0
        %938 = vmatpush.bf16.msra.mxu0 0
        %939 = vmatpush.bf16.msra.mxu0 0
        %940 = vmatpush.bf16.msra.mxu0 0
        %941 = vmatpush.bf16.msra.mxu0 0
        %942 = vmatpush.bf16.msra.mxu0 0
        %943 = vmatpush.bf16.msra.mxu0 0
        %944 = vmatpush.bf16.msra.mxu0 %v935
        %945 = vmatmul.bf16.gmra.mxu0 %v485
        %v946 = vpop.f32.mrf.mxu0
        %v947 = vadd.f32 0.0, %v946
        %v948 = vpop.f32.mrf.mxu0
        %v949 = vadd.f32 0.0, %v948
        %950 = vdwg.mxu0
        %v953 = vunpack.c.l.b16 %v893
        %v954 = vunpack.c.l.b16 %v894
        %v955 = vpack.c.b16 %v954, %v953
        %957 = vmatpush.bf16.msra.mxu0 0
        %958 = vmatpush.bf16.msra.mxu0 0
        %959 = vmatpush.bf16.msra.mxu0 0
        %960 = vmatpush.bf16.msra.mxu0 0
        %961 = vmatpush.bf16.msra.mxu0 0
        %962 = vmatpush.bf16.msra.mxu0 0
        %963 = vmatpush.bf16.msra.mxu0 0
        %964 = vmatpush.bf16.msra.mxu0 %v955
        %965 = vmatmul.bf16.gmra.mxu0 %v513
        %v966 = vpop.f32.mrf.mxu0
        %v967 = vadd.f32 0.0, %v966
        %v968 = vpop.f32.mrf.mxu0
        %v969 = vadd.f32 0.0, %v968
        %970 = vdwg.mxu0
        %v973 = vunpack.c.l.b16 %v895
        %v974 = vunpack.c.l.b16 %v896
        %v975 = vpack.c.b16 %v974, %v973
        %977 = vmatpush.bf16.msra.mxu0 0
        %978 = vmatpush.bf16.msra.mxu0 0
        %979 = vmatpush.bf16.msra.mxu0 0
        %980 = vmatpush.bf16.msra.mxu0 0
        %981 = vmatpush.bf16.msra.mxu0 0
        %982 = vmatpush.bf16.msra.mxu0 0
        %983 = vmatpush.bf16.msra.mxu0 0
        %984 = vmatpush.bf16.msra.mxu0 %v975
        %985 = vmatmul.bf16.gmra.mxu0 %v541
        %v986 = vpop.f32.mrf.mxu0
        %v987 = vadd.f32 0.0, %v986
        %v988 = vpop.f32.mrf.mxu0
        %v989 = vadd.f32 0.0, %v988
        %990 = vdwg.mxu0
        %v993 = vunpack.c.l.b16 %v897
        %v994 = vunpack.c.l.b16 %v898
        %v995 = vpack.c.b16 %v994, %v993
        %997 = vmatpush.bf16.msra.mxu0 0
        %998 = vmatpush.bf16.msra.mxu0 0
        %999 = vmatpush.bf16.msra.mxu0 0
        %1000 = vmatpush.bf16.msra.mxu0 0
        %1001 = vmatpush.bf16.msra.mxu0 0
        %1002 = vmatpush.bf16.msra.mxu0 0
        %1003 = vmatpush.bf16.msra.mxu0 0
        %1004 = vmatpush.bf16.msra.mxu0 %v995
        %1005 = vmatmul.bf16.gmra.mxu0 %v569
        %v1006 = vpop.f32.mrf.mxu0
        %v1007 = vadd.f32 0.0, %v1006
        %v1008 = vpop.f32.mrf.mxu0
        %v1009 = vadd.f32 0.0, %v1008
        %1010 = vdwg.mxu0
        %v1013 = vunpack.c.l.b16 %v899
        %v1014 = vunpack.c.l.b16 %v900
        %v1015 = vpack.c.b16 %v1014, %v1013
        %1017 = vmatpush.bf16.msra.mxu0 0
        %1018 = vmatpush.bf16.msra.mxu0 0
        %1019 = vmatpush.bf16.msra.mxu0 0
        %1020 = vmatpush.bf16.msra.mxu0 0
        %1021 = vmatpush.bf16.msra.mxu0 0
        %1022 = vmatpush.bf16.msra.mxu0 0
        %1023 = vmatpush.bf16.msra.mxu0 0
        %1024 = vmatpush.bf16.msra.mxu0 %v1015
        %1025 = vmatmul.bf16.gmra.mxu0 %v597
        %v1026 = vpop.f32.mrf.mxu0
        %v1027 = vadd.f32 0.0, %v1026
        %v1028 = vpop.f32.mrf.mxu0
        %v1029 = vadd.f32 0.0, %v1028
        %1030 = vdwg.mxu0
        %v1033 = vunpack.c.l.b16 %v901
        %v1034 = vunpack.c.l.b16 %v902
        %v1035 = vpack.c.b16 %v1034, %v1033
        %1037 = vmatpush.bf16.msra.mxu0 0
        %1038 = vmatpush.bf16.msra.mxu0 0
        %1039 = vmatpush.bf16.msra.mxu0 0
        %1040 = vmatpush.bf16.msra.mxu0 0
        %1041 = vmatpush.bf16.msra.mxu0 0
        %1042 = vmatpush.bf16.msra.mxu0 0
        %1043 = vmatpush.bf16.msra.mxu0 0
        %1044 = vmatpush.bf16.msra.mxu0 %v1035
        %1045 = vmatmul.bf16.gmra.mxu0 %v625
        %v1046 = vpop.f32.mrf.mxu0
        %v1047 = vadd.f32 0.0, %v1046
        %v1048 = vpop.f32.mrf.mxu0
        %v1049 = vadd.f32 0.0, %v1048
        %1050 = vdwg.mxu0
        %v1053 = vunpack.c.l.b16 %v903
        %v1054 = vunpack.c.l.b16 %v904
        %v1055 = vpack.c.b16 %v1054, %v1053
        %1057 = vmatpush.bf16.msra.mxu0 0
        %1058 = vmatpush.bf16.msra.mxu0 0
        %1059 = vmatpush.bf16.msra.mxu0 0
        %1060 = vmatpush.bf16.msra.mxu0 0
        %1061 = vmatpush.bf16.msra.mxu0 0
        %1062 = vmatpush.bf16.msra.mxu0 0
        %1063 = vmatpush.bf16.msra.mxu0 0
        %1064 = vmatpush.bf16.msra.mxu0 %v1055
        %1065 = vmatmul.bf16.gmra.mxu0 %v653
        %v1066 = vpop.f32.mrf.mxu0
        %v1067 = vadd.f32 0.0, %v1066
        %v1068 = vpop.f32.mrf.mxu0
        %v1069 = vadd.f32 0.0, %v1068
        %1070 = vdwg.mxu0
        %v1071 = vpack.c.bf16 %v927, %v927
        %v1072 = vpack.c.bf16 %v929, %v929
        %v1073 = vpack.c.bf16 %v947, %v947
        %v1074 = vpack.c.bf16 %v949, %v949
        %v1075 = vpack.c.bf16 %v967, %v967
        %v1076 = vpack.c.bf16 %v969, %v969
        %v1077 = vpack.c.bf16 %v987, %v987
        %v1078 = vpack.c.bf16 %v989, %v989
        %v1079 = vpack.c.bf16 %v1007, %v1007
        %v1080 = vpack.c.bf16 %v1009, %v1009
        %v1081 = vpack.c.bf16 %v1027, %v1027
        %v1082 = vpack.c.bf16 %v1029, %v1029
        %v1083 = vpack.c.bf16 %v1047, %v1047
        %v1084 = vpack.c.bf16 %v1049, %v1049
        %v1085 = vpack.c.bf16 %v1067, %v1067
        %v1086 = vpack.c.bf16 %v1069, %v1069
        %v1103 = vunpack.c.l.b16 %v1071
        %v1104 = vunpack.c.l.b16 %v1072
        %v1105 = vunpack.c.l.b16 %v1073
        %v1106 = vunpack.c.l.b16 %v1074
        %v1107 = vunpack.c.l.b16 %v1075
        %v1108 = vunpack.c.l.b16 %v1076
        %v1109 = vunpack.c.l.b16 %v1077
        %v1110 = vunpack.c.l.b16 %v1078
        %v1111 = vunpack.c.l.b16 %v1079
        %v1112 = vunpack.c.l.b16 %v1080
        %v1113 = vunpack.c.l.b16 %v1081
        %v1114 = vunpack.c.l.b16 %v1082
        %v1115 = vunpack.c.l.b16 %v1083
        %v1116 = vunpack.c.l.b16 %v1084
        %v1117 = vunpack.c.l.b16 %v1085
        %v1118 = vunpack.c.l.b16 %v1086
        %v1119 = vpack.c.b16 %v1104, %v1103
        %v1120 = vpack.c.b16 %v1106, %v1105
        %v1121 = vpack.c.b16 %v1108, %v1107
        %v1122 = vpack.c.b16 %v1110, %v1109
        %v1123 = vpack.c.b16 %v1112, %v1111
        %v1124 = vpack.c.b16 %v1114, %v1113
        %v1125 = vpack.c.b16 %v1116, %v1115
        %v1126 = vpack.c.b16 %v1118, %v1117
        %1127 = vrot.lane.b32.xlu0 %v915, 16
        %v1128 = vpop.permute.xlu0 %1127
        %1129 = vrot.lane.b32.xlu0 %v935, 16
        %v1130 = vpop.permute.xlu0 %1129
        %1131 = vrot.lane.b32.xlu0 %v955, 16
        %v1132 = vpop.permute.xlu0 %1131
        %1133 = vrot.lane.b32.xlu0 %v975, 16
        %v1134 = vpop.permute.xlu0 %1133
        %1135 = vrot.lane.b32.xlu0 %v995, 16
        %v1136 = vpop.permute.xlu0 %1135
        %1137 = vrot.lane.b32.xlu0 %v1015, 16
        %v1138 = vpop.permute.xlu0 %1137
        %1139 = vrot.lane.b32.xlu0 %v1035, 16
        %v1140 = vpop.permute.xlu0 %1139
        %1141 = vrot.lane.b32.xlu0 %v1055, 16
        %v1142 = vpop.permute.xlu0 %1141
        %v1145 = vsel %vm455, %v1119, %v1128
        %v1148 = vsel %vm455, %v1120, %v1130
        %v1151 = vsel %vm455, %v1121, %v1132
        %v1154 = vsel %vm455, %v1122, %v1134
        %v1157 = vsel %vm455, %v1123, %v1136
        %v1160 = vsel %vm455, %v1124, %v1138
        %v1163 = vsel %vm455, %v1125, %v1140
        %v1166 = vsel %vm455, %v1126, %v1142
        %v1168 = vperm.slane %v909, 0
        %v1174 = vunpack.c.l.b16 %v905
        %v1175 = vunpack.c.l.b16 %v906
        %v1176 = vunpack.c.l.b16 %v907
        %v1177 = vunpack.c.l.b16 %v908
        %v1178 = vpack.c.b16 %v1175, %v1174
        %v1179 = vpack.c.b16 %v1177, %v1176
        %vm1182 = vcmask 261120
        %v1183 = vsel %vm1182, %v1145, 0
        %v1185 = vsel %vm1182, %v1148, 0
        %v1187 = vsel %vm1182, %v1151, 0
        %v1189 = vsel %vm1182, %v1154, 0
        %v1191 = vsel %vm1182, %v1157, 0
        %v1193 = vsel %vm1182, %v1160, 0
        %v1195 = vsel %vm1182, %v1163, 0
        %v1197 = vsel %vm1182, %v1166, 0
        %1199 = vmatpush.bf16.msra.mxu0 0
        %1200 = vmatpush.bf16.msra.mxu0 0
        %1201 = vmatpush.bf16.msra.mxu0 0
        %1202 = vmatpush.bf16.msra.mxu0 0
        %1203 = vmatpush.bf16.msra.mxu0 0
        %1204 = vmatpush.bf16.msra.mxu0 0
        %1205 = vmatpush.bf16.msra.mxu0 %v1179
        %1206 = vmatpush.bf16.msra.mxu0 %v1178
        %1207 = vmatmul.bf16.gmra.mxu0 %v1183
        %v1208 = vpop.f32.mrf.mxu0
        %v1209 = vadd.f32 %v1168, %v1208
        %v1210 = vpop.f32.mrf.mxu0
        %v1211 = vadd.f32 %v1168, %v1210
        %1212 = vmatmul.bf16.gmra.mxu0 %v1185
        %v1213 = vpop.f32.mrf.mxu0
        %v1214 = vadd.f32 %v1168, %v1213
        %v1215 = vpop.f32.mrf.mxu0
        %v1216 = vadd.f32 %v1168, %v1215
        %1217 = vmatmul.bf16.gmra.mxu0 %v1187
        %v1218 = vpop.f32.mrf.mxu0
        %v1219 = vadd.f32 %v1168, %v1218
        %v1220 = vpop.f32.mrf.mxu0
        %v1221 = vadd.f32 %v1168, %v1220
        %1222 = vmatmul.bf16.gmra.mxu0 %v1189
        %v1223 = vpop.f32.mrf.mxu0
        %v1224 = vadd.f32 %v1168, %v1223
        %v1225 = vpop.f32.mrf.mxu0
        %v1226 = vadd.f32 %v1168, %v1225
        %1227 = vmatmul.bf16.gmra.mxu0 %v1191
        %v1228 = vpop.f32.mrf.mxu0
        %v1229 = vadd.f32 %v1168, %v1228
        %v1230 = vpop.f32.mrf.mxu0
        %v1231 = vadd.f32 %v1168, %v1230
        %1232 = vmatmul.bf16.gmra.mxu0 %v1193
        %v1233 = vpop.f32.mrf.mxu0
        %v1234 = vadd.f32 %v1168, %v1233
        %v1235 = vpop.f32.mrf.mxu0
        %v1236 = vadd.f32 %v1168, %v1235
        %1237 = vmatmul.bf16.gmra.mxu0 %v1195
        %v1238 = vpop.f32.mrf.mxu0
        %v1239 = vadd.f32 %v1168, %v1238
        %v1240 = vpop.f32.mrf.mxu0
        %v1241 = vadd.f32 %v1168, %v1240
        %1242 = vmatmul.bf16.gmra.mxu0 %v1197
        %v1243 = vpop.f32.mrf.mxu0
        %v1244 = vadd.f32 %v1168, %v1243
        %v1245 = vpop.f32.mrf.mxu0
        %v1246 = vadd.f32 %v1168, %v1245
        %1247 = vdwg.mxu0
        %vm1248 = vcmp.ge.f32.partialorder %v1209, 0.0
        %vm1249 = vcmp.ge.f32.partialorder %v1211, 0.0
        %vm1250 = vcmp.ge.f32.partialorder %v1214, 0.0
        %vm1251 = vcmp.ge.f32.partialorder %v1216, 0.0
        %vm1252 = vcmp.ge.f32.partialorder %v1219, 0.0
        %vm1253 = vcmp.ge.f32.partialorder %v1221, 0.0
        %vm1254 = vcmp.ge.f32.partialorder %v1224, 0.0
        %vm1255 = vcmp.ge.f32.partialorder %v1226, 0.0
        %vm1256 = vcmp.ge.f32.partialorder %v1229, 0.0
        %vm1257 = vcmp.ge.f32.partialorder %v1231, 0.0
        %vm1258 = vcmp.ge.f32.partialorder %v1234, 0.0
        %vm1259 = vcmp.ge.f32.partialorder %v1236, 0.0
        %vm1260 = vcmp.ge.f32.partialorder %v1239, 0.0
        %vm1261 = vcmp.ge.f32.partialorder %v1241, 0.0
        %vm1262 = vcmp.ge.f32.partialorder %v1244, 0.0
        %vm1263 = vcmp.ge.f32.partialorder %v1246, 0.0
        %v1264 = vstv %s910
        %v1265 = vmul.f32 %v1264, %v1209
        %v1266 = vmul.f32 %v1264, %v1211
        %v1267 = vmul.f32 %v1264, %v1214
        %v1268 = vmul.f32 %v1264, %v1216
        %v1269 = vmul.f32 %v1264, %v1219
        %v1270 = vmul.f32 %v1264, %v1221
        %v1271 = vmul.f32 %v1264, %v1224
        %v1272 = vmul.f32 %v1264, %v1226
        %v1273 = vmul.f32 %v1264, %v1229
        %v1274 = vmul.f32 %v1264, %v1231
        %v1275 = vmul.f32 %v1264, %v1234
        %v1276 = vmul.f32 %v1264, %v1236
        %v1277 = vmul.f32 %v1264, %v1239
        %v1278 = vmul.f32 %v1264, %v1241
        %v1279 = vmul.f32 %v1264, %v1244
        %v1280 = vmul.f32 %v1264, %v1246
        %v1281 = vsel %vm1248, %v1209, %v1265
        %v1282 = vsel %vm1249, %v1211, %v1266
        %v1283 = vsel %vm1250, %v1214, %v1267
        %v1284 = vsel %vm1251, %v1216, %v1268
        %v1285 = vsel %vm1252, %v1219, %v1269
        %v1286 = vsel %vm1253, %v1221, %v1270
        %v1287 = vsel %vm1254, %v1224, %v1271
        %v1288 = vsel %vm1255, %v1226, %v1272
        %v1289 = vsel %vm1256, %v1229, %v1273
        %v1290 = vsel %vm1257, %v1231, %v1274
        %v1291 = vsel %vm1258, %v1234, %v1275
        %v1292 = vsel %vm1259, %v1236, %v1276
        %v1293 = vsel %vm1260, %v1239, %v1277
        %v1294 = vsel %vm1261, %v1241, %v1278
        %v1295 = vsel %vm1262, %v1244, %v1279
        %v1296 = vsel %vm1263, %v1246, %v1280
        %v1297 = vpack.c.bf16 %v1282, %v1281
        %v1298 = vpack.c.bf16 %v1284, %v1283
        %v1299 = vpack.c.bf16 %v1286, %v1285
        %v1300 = vpack.c.bf16 %v1288, %v1287
        %v1301 = vpack.c.bf16 %v1290, %v1289
        %v1302 = vpack.c.bf16 %v1292, %v1291
        %v1303 = vpack.c.bf16 %v1294, %v1293
        %v1304 = vpack.c.bf16 %v1296, %v1295
        %v1305 = vld [vmem:[%s6] sm:$0xf]
        %v1306 = vld [vmem:[%s6 + $0x4] sm:$0xf]
        %v1307 = vld [vmem:[%s7] sm:$0xf]
        %v1308 = vld [vmem:[%s7 + $0x4] sm:$0xf]
        %v1309 = vld [vmem:[%s8] sm:$0x1]
        %s1310 = sld [smem:[#allocation2 + $0x2]]
        %v1313 = vunpack.c.l.b16 %v1305
        %v1314 = vunpack.c.l.b16 %v1306
        %v1315 = vpack.c.b16 %v1314, %v1313
        %v1318 = vsel %vm455, %v1297, 0
        %v1321 = vsel %vm455, %v1298, 0
        %v1324 = vsel %vm455, %v1299, 0
        %v1327 = vsel %vm455, %v1300, 0
        %v1330 = vsel %vm455, %v1301, 0
        %v1333 = vsel %vm455, %v1302, 0
        %v1336 = vsel %vm455, %v1303, 0
        %v1339 = vsel %vm455, %v1304, 0
        %1341 = vmatpush.bf16.msra.mxu0 0
        %1342 = vmatpush.bf16.msra.mxu0 0
        %1343 = vmatpush.bf16.msra.mxu0 0
        %1344 = vmatpush.bf16.msra.mxu0 0
        %1345 = vmatpush.bf16.msra.mxu0 0
        %1346 = vmatpush.bf16.msra.mxu0 0
        %1347 = vmatpush.bf16.msra.mxu0 0
        %1348 = vmatpush.bf16.msra.mxu0 %v1315
        %1349 = vmatmul.bf16.gmra.mxu0 %v1318
        %v1350 = vpop.f32.mrf.mxu0
        %v1351 = vadd.f32 0.0, %v1350
        %v1352 = vpop.f32.mrf.mxu0
        %v1353 = vadd.f32 0.0, %v1352
        %1354 = vmatmul.bf16.gmra.mxu0 %v1321
        %v1355 = vpop.f32.mrf.mxu0
        %v1356 = vadd.f32 0.0, %v1355
        %v1357 = vpop.f32.mrf.mxu0
        %v1358 = vadd.f32 0.0, %v1357
        %1359 = vmatmul.bf16.gmra.mxu0 %v1324
        %v1360 = vpop.f32.mrf.mxu0
        %v1361 = vadd.f32 0.0, %v1360
        %v1362 = vpop.f32.mrf.mxu0
        %v1363 = vadd.f32 0.0, %v1362
        %1364 = vmatmul.bf16.gmra.mxu0 %v1327
        %v1365 = vpop.f32.mrf.mxu0
        %v1366 = vadd.f32 0.0, %v1365
        %v1367 = vpop.f32.mrf.mxu0
        %v1368 = vadd.f32 0.0, %v1367
        %1369 = vmatmul.bf16.gmra.mxu0 %v1330
        %v1370 = vpop.f32.mrf.mxu0
        %v1371 = vadd.f32 0.0, %v1370
        %v1372 = vpop.f32.mrf.mxu0
        %v1373 = vadd.f32 0.0, %v1372
        %1374 = vmatmul.bf16.gmra.mxu0 %v1333
        %v1375 = vpop.f32.mrf.mxu0
        %v1376 = vadd.f32 0.0, %v1375
        %v1377 = vpop.f32.mrf.mxu0
        %v1378 = vadd.f32 0.0, %v1377
        %1379 = vmatmul.bf16.gmra.mxu0 %v1336
        %v1380 = vpop.f32.mrf.mxu0
        %v1381 = vadd.f32 0.0, %v1380
        %v1382 = vpop.f32.mrf.mxu0
        %v1383 = vadd.f32 0.0, %v1382
        %1384 = vmatmul.bf16.gmra.mxu0 %v1339
        %v1385 = vpop.f32.mrf.mxu0
        %v1386 = vadd.f32 0.0, %v1385
        %v1387 = vpop.f32.mrf.mxu0
        %v1388 = vadd.f32 0.0, %v1387
        %1389 = vdwg.mxu0
        %v1390 = vpack.c.bf16 %v1351, %v1351
        %v1391 = vpack.c.bf16 %v1353, %v1353
        %v1392 = vpack.c.bf16 %v1356, %v1356
        %v1393 = vpack.c.bf16 %v1358, %v1358
        %v1394 = vpack.c.bf16 %v1361, %v1361
        %v1395 = vpack.c.bf16 %v1363, %v1363
        %v1396 = vpack.c.bf16 %v1366, %v1366
        %v1397 = vpack.c.bf16 %v1368, %v1368
        %v1398 = vpack.c.bf16 %v1371, %v1371
        %v1399 = vpack.c.bf16 %v1373, %v1373
        %v1400 = vpack.c.bf16 %v1376, %v1376
        %v1401 = vpack.c.bf16 %v1378, %v1378
        %v1402 = vpack.c.bf16 %v1381, %v1381
        %v1403 = vpack.c.bf16 %v1383, %v1383
        %v1404 = vpack.c.bf16 %v1386, %v1386
        %v1405 = vpack.c.bf16 %v1388, %v1388
        %v1408 = vunpack.c.l.b16 %v1390
        %v1409 = vunpack.c.l.b16 %v1391
        %v1410 = vpack.c.b16 %v1409, %v1408
        %1412 = vmatpush.bf16.msra.mxu0 0
        %1413 = vmatpush.bf16.msra.mxu0 0
        %1414 = vmatpush.bf16.msra.mxu0 0
        %1415 = vmatpush.bf16.msra.mxu0 0
        %1416 = vmatpush.bf16.msra.mxu0 0
        %1417 = vmatpush.bf16.msra.mxu0 0
        %1418 = vmatpush.bf16.msra.mxu0 0
        %1419 = vmatpush.bf16.msra.mxu0 %v1410
        %1420 = vmatmul.bf16.gmra.mxu0 %v457
        %v1421 = vpop.f32.mrf.mxu0
        %v1422 = vadd.f32 0.0, %v1421
        %v1423 = vpop.f32.mrf.mxu0
        %v1424 = vadd.f32 0.0, %v1423
        %1425 = vdwg.mxu0
        %v1428 = vunpack.c.l.b16 %v1392
        %v1429 = vunpack.c.l.b16 %v1393
        %v1430 = vpack.c.b16 %v1429, %v1428
        %1432 = vmatpush.bf16.msra.mxu0 0
        %1433 = vmatpush.bf16.msra.mxu0 0
        %1434 = vmatpush.bf16.msra.mxu0 0
        %1435 = vmatpush.bf16.msra.mxu0 0
        %1436 = vmatpush.bf16.msra.mxu0 0
        %1437 = vmatpush.bf16.msra.mxu0 0
        %1438 = vmatpush.bf16.msra.mxu0 0
        %1439 = vmatpush.bf16.msra.mxu0 %v1430
        %1440 = vmatmul.bf16.gmra.mxu0 %v485
        %v1441 = vpop.f32.mrf.mxu0
        %v1442 = vadd.f32 0.0, %v1441
        %v1443 = vpop.f32.mrf.mxu0
        %v1444 = vadd.f32 0.0, %v1443
        %1445 = vdwg.mxu0
        %v1448 = vunpack.c.l.b16 %v1394
        %v1449 = vunpack.c.l.b16 %v1395
        %v1450 = vpack.c.b16 %v1449, %v1448
        %1452 = vmatpush.bf16.msra.mxu0 0
        %1453 = vmatpush.bf16.msra.mxu0 0
        %1454 = vmatpush.bf16.msra.mxu0 0
        %1455 = vmatpush.bf16.msra.mxu0 0
        %1456 = vmatpush.bf16.msra.mxu0 0
        %1457 = vmatpush.bf16.msra.mxu0 0
        %1458 = vmatpush.bf16.msra.mxu0 0
        %1459 = vmatpush.bf16.msra.mxu0 %v1450
        %1460 = vmatmul.bf16.gmra.mxu0 %v513
        %v1461 = vpop.f32.mrf.mxu0
        %v1462 = vadd.f32 0.0, %v1461
        %v1463 = vpop.f32.mrf.mxu0
        %v1464 = vadd.f32 0.0, %v1463
        %1465 = vdwg.mxu0
        %v1468 = vunpack.c.l.b16 %v1396
        %v1469 = vunpack.c.l.b16 %v1397
        %v1470 = vpack.c.b16 %v1469, %v1468
        %1472 = vmatpush.bf16.msra.mxu0 0
        %1473 = vmatpush.bf16.msra.mxu0 0
        %1474 = vmatpush.bf16.msra.mxu0 0
        %1475 = vmatpush.bf16.msra.mxu0 0
        %1476 = vmatpush.bf16.msra.mxu0 0
        %1477 = vmatpush.bf16.msra.mxu0 0
        %1478 = vmatpush.bf16.msra.mxu0 0
        %1479 = vmatpush.bf16.msra.mxu0 %v1470
        %1480 = vmatmul.bf16.gmra.mxu0 %v541
        %v1481 = vpop.f32.mrf.mxu0
        %v1482 = vadd.f32 0.0, %v1481
        %v1483 = vpop.f32.mrf.mxu0
        %v1484 = vadd.f32 0.0, %v1483
        %1485 = vdwg.mxu0
        %v1488 = vunpack.c.l.b16 %v1398
        %v1489 = vunpack.c.l.b16 %v1399
        %v1490 = vpack.c.b16 %v1489, %v1488
        %1492 = vmatpush.bf16.msra.mxu0 0
        %1493 = vmatpush.bf16.msra.mxu0 0
        %1494 = vmatpush.bf16.msra.mxu0 0
        %1495 = vmatpush.bf16.msra.mxu0 0
        %1496 = vmatpush.bf16.msra.mxu0 0
        %1497 = vmatpush.bf16.msra.mxu0 0
        %1498 = vmatpush.bf16.msra.mxu0 0
        %1499 = vmatpush.bf16.msra.mxu0 %v1490
        %1500 = vmatmul.bf16.gmra.mxu0 %v569
        %v1501 = vpop.f32.mrf.mxu0
        %v1502 = vadd.f32 0.0, %v1501
        %v1503 = vpop.f32.mrf.mxu0
        %v1504 = vadd.f32 0.0, %v1503
        %1505 = vdwg.mxu0
        %v1508 = vunpack.c.l.b16 %v1400
        %v1509 = vunpack.c.l.b16 %v1401
        %v1510 = vpack.c.b16 %v1509, %v1508
        %1512 = vmatpush.bf16.msra.mxu0 0
        %1513 = vmatpush.bf16.msra.mxu0 0
        %1514 = vmatpush.bf16.msra.mxu0 0
        %1515 = vmatpush.bf16.msra.mxu0 0
        %1516 = vmatpush.bf16.msra.mxu0 0
        %1517 = vmatpush.bf16.msra.mxu0 0
        %1518 = vmatpush.bf16.msra.mxu0 0
        %1519 = vmatpush.bf16.msra.mxu0 %v1510
        %1520 = vmatmul.bf16.gmra.mxu0 %v597
        %v1521 = vpop.f32.mrf.mxu0
        %v1522 = vadd.f32 0.0, %v1521
        %v1523 = vpop.f32.mrf.mxu0
        %v1524 = vadd.f32 0.0, %v1523
        %1525 = vdwg.mxu0
        %v1528 = vunpack.c.l.b16 %v1402
        %v1529 = vunpack.c.l.b16 %v1403
        %v1530 = vpack.c.b16 %v1529, %v1528
        %1532 = vmatpush.bf16.msra.mxu0 0
        %1533 = vmatpush.bf16.msra.mxu0 0
        %1534 = vmatpush.bf16.msra.mxu0 0
        %1535 = vmatpush.bf16.msra.mxu0 0
        %1536 = vmatpush.bf16.msra.mxu0 0
        %1537 = vmatpush.bf16.msra.mxu0 0
        %1538 = vmatpush.bf16.msra.mxu0 0
        %1539 = vmatpush.bf16.msra.mxu0 %v1530
        %1540 = vmatmul.bf16.gmra.mxu0 %v625
        %v1541 = vpop.f32.mrf.mxu0
        %v1542 = vadd.f32 0.0, %v1541
        %v1543 = vpop.f32.mrf.mxu0
        %v1544 = vadd.f32 0.0, %v1543
        %1545 = vdwg.mxu0
        %v1548 = vunpack.c.l.b16 %v1404
        %v1549 = vunpack.c.l.b16 %v1405
        %v1550 = vpack.c.b16 %v1549, %v1548
        %1552 = vmatpush.bf16.msra.mxu0 0
        %1553 = vmatpush.bf16.msra.mxu0 0
        %1554 = vmatpush.bf16.msra.mxu0 0
        %1555 = vmatpush.bf16.msra.mxu0 0
        %1556 = vmatpush.bf16.msra.mxu0 0
        %1557 = vmatpush.bf16.msra.mxu0 0
        %1558 = vmatpush.bf16.msra.mxu0 0
        %1559 = vmatpush.bf16.msra.mxu0 %v1550
        %1560 = vmatmul.bf16.gmra.mxu0 %v653
        %v1561 = vpop.f32.mrf.mxu0
        %v1562 = vadd.f32 0.0, %v1561
        %v1563 = vpop.f32.mrf.mxu0
        %v1564 = vadd.f32 0.0, %v1563
        %1565 = vdwg.mxu0
        %v1568 = vunpack.c.l.b16 %v1307
        %v1569 = vunpack.c.l.b16 %v1308
        %v1570 = vpack.c.b16 %v1569, %v1568
        %1572 = vmatpush.bf16.msra.mxu0 0
        %1573 = vmatpush.bf16.msra.mxu0 0
        %1574 = vmatpush.bf16.msra.mxu0 0
        %1575 = vmatpush.bf16.msra.mxu0 0
        %1576 = vmatpush.bf16.msra.mxu0 0
        %1577 = vmatpush.bf16.msra.mxu0 0
        %1578 = vmatpush.bf16.msra.mxu0 0
        %1579 = vmatpush.bf16.msra.mxu0 %v1570
        %1580 = vmatmul.bf16.gmra.mxu0 %v1318
        %v1581 = vpop.f32.mrf.mxu0
        %v1582 = vadd.f32 0.0, %v1581
        %v1583 = vpop.f32.mrf.mxu0
        %v1584 = vadd.f32 0.0, %v1583
        %1585 = vmatmul.bf16.gmra.mxu0 %v1321
        %v1586 = vpop.f32.mrf.mxu0
        %v1587 = vadd.f32 0.0, %v1586
        %v1588 = vpop.f32.mrf.mxu0
        %v1589 = vadd.f32 0.0, %v1588
        %1590 = vmatmul.bf16.gmra.mxu0 %v1324
        %v1591 = vpop.f32.mrf.mxu0
        %v1592 = vadd.f32 0.0, %v1591
        %v1593 = vpop.f32.mrf.mxu0
        %v1594 = vadd.f32 0.0, %v1593
        %1595 = vmatmul.bf16.gmra.mxu0 %v1327
        %v1596 = vpop.f32.mrf.mxu0
        %v1597 = vadd.f32 0.0, %v1596
        %v1598 = vpop.f32.mrf.mxu0
        %v1599 = vadd.f32 0.0, %v1598
        %1600 = vmatmul.bf16.gmra.mxu0 %v1330
        %v1601 = vpop.f32.mrf.mxu0
        %v1602 = vadd.f32 0.0, %v1601
        %v1603 = vpop.f32.mrf.mxu0
        %v1604 = vadd.f32 0.0, %v1603
        %1605 = vmatmul.bf16.gmra.mxu0 %v1333
        %v1606 = vpop.f32.mrf.mxu0
        %v1607 = vadd.f32 0.0, %v1606
        %v1608 = vpop.f32.mrf.mxu0
        %v1609 = vadd.f32 0.0, %v1608
        %1610 = vmatmul.bf16.gmra.mxu0 %v1336
        %v1611 = vpop.f32.mrf.mxu0
        %v1612 = vadd.f32 0.0, %v1611
        %v1613 = vpop.f32.mrf.mxu0
        %v1614 = vadd.f32 0.0, %v1613
        %1615 = vmatmul.bf16.gmra.mxu0 %v1339
        %v1616 = vpop.f32.mrf.mxu0
        %v1617 = vadd.f32 0.0, %v1616
        %v1618 = vpop.f32.mrf.mxu0
        %v1619 = vadd.f32 0.0, %v1618
        %1620 = vdwg.mxu0
        %v1621 = vadd.f32 %v1422, %v1582
        %v1622 = vadd.f32 %v1424, %v1584
        %v1623 = vadd.f32 %v1442, %v1587
        %v1624 = vadd.f32 %v1444, %v1589
        %v1625 = vadd.f32 %v1462, %v1592
        %v1626 = vadd.f32 %v1464, %v1594
        %v1627 = vadd.f32 %v1482, %v1597
        %v1628 = vadd.f32 %v1484, %v1599
        %v1629 = vadd.f32 %v1502, %v1602
        %v1630 = vadd.f32 %v1504, %v1604
        %v1631 = vadd.f32 %v1522, %v1607
        %v1632 = vadd.f32 %v1524, %v1609
        %v1633 = vadd.f32 %v1542, %v1612
        %v1634 = vadd.f32 %v1544, %v1614
        %v1635 = vadd.f32 %v1562, %v1617
        %v1636 = vadd.f32 %v1564, %v1619
        %v1638 = vperm.slane %v1309, 0
        %v1640 = vadd.f32 %v1621, %v1638
        %v1641 = vadd.f32 %v1622, %v1638
        %v1642 = vadd.f32 %v1623, %v1638
        %v1643 = vadd.f32 %v1624, %v1638
        %v1644 = vadd.f32 %v1625, %v1638
        %v1645 = vadd.f32 %v1626, %v1638
        %v1646 = vadd.f32 %v1627, %v1638
        %v1647 = vadd.f32 %v1628, %v1638
        %v1648 = vadd.f32 %v1629, %v1638
        %v1649 = vadd.f32 %v1630, %v1638
        %v1650 = vadd.f32 %v1631, %v1638
        %v1651 = vadd.f32 %v1632, %v1638
        %v1652 = vadd.f32 %v1633, %v1638
        %v1653 = vadd.f32 %v1634, %v1638
        %v1654 = vadd.f32 %v1635, %v1638
        %v1655 = vadd.f32 %v1636, %v1638
        %vm1656 = vcmp.ge.f32.partialorder %v1640, 0.0
        %vm1657 = vcmp.ge.f32.partialorder %v1641, 0.0
        %vm1658 = vcmp.ge.f32.partialorder %v1642, 0.0
        %vm1659 = vcmp.ge.f32.partialorder %v1643, 0.0
        %vm1660 = vcmp.ge.f32.partialorder %v1644, 0.0
        %vm1661 = vcmp.ge.f32.partialorder %v1645, 0.0
        %vm1662 = vcmp.ge.f32.partialorder %v1646, 0.0
        %vm1663 = vcmp.ge.f32.partialorder %v1647, 0.0
        %vm1664 = vcmp.ge.f32.partialorder %v1648, 0.0
        %vm1665 = vcmp.ge.f32.partialorder %v1649, 0.0
        %vm1666 = vcmp.ge.f32.partialorder %v1650, 0.0
        %vm1667 = vcmp.ge.f32.partialorder %v1651, 0.0
        %vm1668 = vcmp.ge.f32.partialorder %v1652, 0.0
        %vm1669 = vcmp.ge.f32.partialorder %v1653, 0.0
        %vm1670 = vcmp.ge.f32.partialorder %v1654, 0.0
        %vm1671 = vcmp.ge.f32.partialorder %v1655, 0.0
        %v1672 = vstv %s1310
        %v1673 = vmul.f32 %v1672, %v1640
        %v1674 = vmul.f32 %v1672, %v1641
        %v1675 = vmul.f32 %v1672, %v1642
        %v1676 = vmul.f32 %v1672, %v1643
        %v1677 = vmul.f32 %v1672, %v1644
        %v1678 = vmul.f32 %v1672, %v1645
        %v1679 = vmul.f32 %v1672, %v1646
        %v1680 = vmul.f32 %v1672, %v1647
        %v1681 = vmul.f32 %v1672, %v1648
        %v1682 = vmul.f32 %v1672, %v1649
        %v1683 = vmul.f32 %v1672, %v1650
        %v1684 = vmul.f32 %v1672, %v1651
        %v1685 = vmul.f32 %v1672, %v1652
        %v1686 = vmul.f32 %v1672, %v1653
        %v1687 = vmul.f32 %v1672, %v1654
        %v1688 = vmul.f32 %v1672, %v1655
        %v1689 = vsel %vm1656, %v1640, %v1673
        %v1690 = vsel %vm1657, %v1641, %v1674
        %v1691 = vsel %vm1658, %v1642, %v1675
        %v1692 = vsel %vm1659, %v1643, %v1676
        %v1693 = vsel %vm1660, %v1644, %v1677
        %v1694 = vsel %vm1661, %v1645, %v1678
        %v1695 = vsel %vm1662, %v1646, %v1679
        %v1696 = vsel %vm1663, %v1647, %v1680
        %v1697 = vsel %vm1664, %v1648, %v1681
        %v1698 = vsel %vm1665, %v1649, %v1682
        %v1699 = vsel %vm1666, %v1650, %v1683
        %v1700 = vsel %vm1667, %v1651, %v1684
        %v1701 = vsel %vm1668, %v1652, %v1685
        %v1702 = vsel %vm1669, %v1653, %v1686
        %v1703 = vsel %vm1670, %v1654, %v1687
        %v1704 = vsel %vm1671, %v1655, %v1688
        %1705 = vst.msk [vmem:[%s405] sm:$0xff] %vm741, %v1689
        %1706 = vst.msk [vmem:[%s405 + $0x8] sm:$0xff] %vm741, %v1690
        %1707 = vst.msk [vmem:[%s405 + $0x10] sm:$0xff] %vm741, %v1691
        %1708 = vst.msk [vmem:[%s405 + $0x18] sm:$0xff] %vm741, %v1692
        %1709 = vst.msk [vmem:[%s405 + $0x20] sm:$0xff] %vm741, %v1693
        %1710 = vst.msk [vmem:[%s405 + $0x28] sm:$0xff] %vm741, %v1694
        %1711 = vst.msk [vmem:[%s405 + $0x30] sm:$0xff] %vm741, %v1695
        %1712 = vst.msk [vmem:[%s405 + $0x38] sm:$0xff] %vm741, %v1696
        %1713 = vst.msk [vmem:[%s405 + $0x40] sm:$0xff] %vm741, %v1697
        %1714 = vst.msk [vmem:[%s405 + $0x48] sm:$0xff] %vm741, %v1698
        %1715 = vst.msk [vmem:[%s405 + $0x50] sm:$0xff] %vm741, %v1699
        %1716 = vst.msk [vmem:[%s405 + $0x58] sm:$0xff] %vm741, %v1700
        %1717 = vst.msk [vmem:[%s405 + $0x60] sm:$0xff] %vm741, %v1701
        %1718 = vst.msk [vmem:[%s405 + $0x68] sm:$0xff] %vm741, %v1702
        %1719 = vst.msk [vmem:[%s405 + $0x70] sm:$0xff] %vm741, %v1703
        %1720 = vst.msk [vmem:[%s405 + $0x78] sm:$0xff] %vm741, %v1704
        %s1721 = smul.u32 8, %s22
        %p1722 = scmp.lt.s32.totalorder %s1721, 15
        %s1723 = scalar_select %p1722, %s1721, 15
        %s1724 = smul.addr %s1723, 2
        %s1725 = smul.addr %s1724, 8
        %s1726 = scalar_lea.vmem %s10, %s1725
        // Predicated region
        $region65: #{connectome_gnn_forward.2} parent=59 // pred_check
          %p1727 = pneg %p260
        $region66: #{connectome_gnn_forward.2} parent=59 // pred_check_branch
          %1729 = sbr.rel (%p1727) target = $region68
        $region67: #{connectome_gnn_forward.2} parent=59 // pred_region
          %s1730 = smul.u32 8, %s22
        $region68: #{connectome_gnn_forward.2} parent=59 // pred_fallthru
          _
      $region60: #{connectome_gnn_forward.2} parent=5 // pred_fallthru
        _
      %p1731 = scmp.le.s32.totalorder 2, %s17
      // Predicated region
      $region69: #{connectome_gnn_forward.2} parent=5 // pred_check
        %p1732 = pneg %p1731
      $region70: #{connectome_gnn_forward.2} parent=5 // pred_check_branch
        %1734 = sbr.rel (%p1732) target = $region72
      $region71: #{connectome_gnn_forward.2} parent=5 // pred_region
        %s1735 = ssub.s32 %s17, 2
        // Predicated region
        $region73: #{connectome_gnn_forward.2} parent=71 // pred_check
          %p1736 = pneg %p266
        $region74: #{connectome_gnn_forward.2} parent=71 // pred_check_branch
          %1738 = sbr.rel (%p1736) target = $region76
        $region75: #{connectome_gnn_forward.2} parent=71 // pred_region
          %s1739 = smul.u32 8, %s23
          %p1740 = scmp.lt.s32.totalorder %s1739, 15
          %s1741 = scalar_select %p1740, %s1739, 15
          %s1742 = smul.addr %s1741, 2
          %s1743 = smul.addr %s1742, 8
          %s1744 = scalar_lea.vmem %s10, %s1743
        $region76: #{connectome_gnn_forward.2} parent=71 // pred_fallthru
          _
      $region72: #{connectome_gnn_forward.2} parent=5 // pred_fallthru
        _
    $region6: #{connectome_gnn_forward.2} parent=1 // loop_footer
      %s21 = sadd.s32 1, %s17
    $region7: #{connectome_gnn_forward.2} parent=1 // loop_footer_branch
      %16 = sbr.rel target = $region3
    $region8: #{connectome_gnn_forward.2} parent=1 // loop_exit
      _
    %1745 = vsyncpa [#allocation3], 1
    %s1746 = scalar_lea.sflag [#allocation3], 1
    %1747 = vsyncpa %s1746, 1

</llo_original>
